<compile_context>
chip_gen: v7x
topology: tpu7x:2x2x1
jax: 0.10.0
libtpu: 0.0.40
codegen_flags: <defaults>
</compile_context>

<pallas_src>
import jax
import jax.numpy as jnp
from jax.experimental import pallas as pl
from jax.experimental.pallas import tpu as pltpu

EPS = 1e-5   # BatchNorm1d default eps
H = 32       # hidden width of fc2 / q / k / v


def prep_kernel(proto_ref, supp_ref, fcw_ref, fcb_ref,
                w2p_ref, w2s_ref, b2_ref, gamma_ref, beta_ref,
                wqkv_ref, bqkv_ref, w3_ref,
                qt_ref, kt_ref, vw_ref):
    proto = proto_ref[...]                       # (C, D)
    C, D = proto.shape
    S = supp_ref.shape[0]                        # support passed as (S, C, D)

    # --- fc: Conv1d(S, 1, 1) over the shot axis -> supplement feature (C, D)
    acc = jnp.zeros_like(proto)
    for s in range(S):                           # S small & static -> unrolled
        acc = acc + supp_ref[s] * fcw_ref[0, s]
    suppl = acc + fcb_ref[0, 0]                  # (C, D)

    # --- fc2: Conv1d(2, 32, 1) on channels [proto, supplement], lane-dense
    #     (C, 32, D) layout (D on lanes, hidden=32 on sublanes).
    pre = (proto[:, None, :] * w2p_ref[...][None]
           + suppl[:, None, :] * w2s_ref[...][None]
           + b2_ref[...][None])                  # (C, 32, D)

    # --- BatchNorm1d(32), training mode: biased batch stats over (C, D) per ch
    n = C * D
    mean = jnp.sum(pre, axis=(0, 2), keepdims=True) / n            # (1, 32, 1)
    var = jnp.sum((pre - mean) ** 2, axis=(0, 2), keepdims=True) / n
    xhat = (pre - mean) * jax.lax.rsqrt(var + EPS)
    fusion = jnp.maximum(xhat * gamma_ref[...][None]
                         + beta_ref[...][None], 0.0)                # (C, 32, D)

    # --- fused q|k|v projection (one (96,32) weight) + fold fc3 weight into V
    wqkv = wqkv_ref[...]                         # (96, 32) = [Wq; Wk; Wv]
    bqkv = bqkv_ref[...]                         # (96, 1)
    w3 = w3_ref[...]                             # (1, 32)
    for c in range(C):                           # C small & static -> unrolled
        qkv_c = jnp.maximum(
            jnp.dot(wqkv, fusion[c], preferred_element_type=jnp.float32) + bqkv,
            0.0)                                 # (96, D)
        qt_ref[c] = qkv_c[0:H, :]                # q^T  (32, D)
        kt_ref[c] = qkv_c[H:2 * H, :]            # k^T  (32, D)
        # vw[c, d] = sum_h v[c, h, d] * w3[h]    (fc3 folded into V)
        vw_ref[c] = jnp.dot(w3, qkv_c[2 * H:3 * H, :],
                            preferred_element_type=jnp.float32)     # (1, D)


def attn_kernel(proto_ref, qt_ref, kt_ref, vw_ref, b3_ref, out_ref):
    # blocks: proto (1,1,D), qt/kt (1,H,D), vw (1,1,D), out (1,1,D)
    q_t = qt_ref[0]                                                  # (H, D)
    k_t = kt_ref[0]                                                  # (H, D)

    # scores^T[e, d] = sum_h k_t[h, e] * q_t[h, d]  -> softmax axis on sublanes
    scores_t = jnp.einsum('he,hd->ed',
                          k_t.astype(jnp.bfloat16), q_t.astype(jnp.bfloat16),
                          preferred_element_type=jnp.float32)        # (D, D)

    m = jnp.max(scores_t, axis=0, keepdims=True)                     # (1, D)
    expv = jnp.exp(scores_t - m)                                     # (D, D)
    l = jnp.sum(expv, axis=0, keepdims=True)                         # (1, D) f32

    # deferred softmax: pv[d] = sum_e vw[e] * expv[e, d]   (fc3 already folded)
    pv = jnp.dot(vw_ref[0].astype(jnp.bfloat16), expv.astype(jnp.bfloat16),
                 preferred_element_type=jnp.float32)                 # (1, D)

    refine = pv * pl.reciprocal(l, approx=True) + b3_ref[0, 0]       # (1, D)
    out_ref[...] = proto_ref[...] + refine[None]                     # (1, 1, D)


def init_params(key, n_support=5, hidden=H):
    ks = jax.random.split(key, 14)
    p = {}
    p['fc_w'] = 0.2 * jax.random.normal(ks[0], (1, n_support), jnp.float32)   # Conv1d(S,1,1).weight[:, :, 0]
    p['fc_b'] = 0.1 * jax.random.normal(ks[1], (1, 1), jnp.float32)
    p['fc2_w'] = 0.2 * jax.random.normal(ks[2], (hidden, 2), jnp.float32)      # Conv1d(2,32,1).weight[:, :, 0]
    p['fc2_b'] = 0.1 * jax.random.normal(ks[3], (1, hidden), jnp.float32)
    p['bn_gamma'] = 1.0 + 0.1 * jax.random.normal(ks[4], (1, hidden), jnp.float32)
    p['bn_beta'] = 0.1 * jax.random.normal(ks[5], (1, hidden), jnp.float32)
    p['wq'] = 0.2 * jax.random.normal(ks[6], (hidden, hidden), jnp.float32)    # Linear(32,32).weight (out, in)
    p['bq'] = 0.1 * jax.random.normal(ks[7], (1, hidden), jnp.float32)
    p['wk'] = 0.2 * jax.random.normal(ks[8], (hidden, hidden), jnp.float32)
    p['bk'] = 0.1 * jax.random.normal(ks[9], (1, hidden), jnp.float32)
    p['wv'] = 0.2 * jax.random.normal(ks[10], (hidden, hidden), jnp.float32)
    p['bv'] = 0.1 * jax.random.normal(ks[11], (1, hidden), jnp.float32)
    p['w3'] = 0.2 * jax.random.normal(ks[12], (1, hidden), jnp.float32)        # Linear(32,1).weight
    p['b3'] = 0.1 * jax.random.normal(ks[13], (1, 1), jnp.float32)
    return p


def enrich_proto_forward(proto_feat, support_feat, params, n_support=5):
    C, D = proto_feat.shape
    proto = proto_feat.astype(jnp.float32)
    # (S, C, D): each shot is a contiguous leading-axis slice inside the kernel
    supp = jnp.transpose(support_feat.reshape(C, n_support, D),
                         (1, 0, 2)).astype(jnp.float32)

    # Re-shape / fuse parameters for the lane-dense kernel layouts.
    w2p = params['fc2_w'][:, 0:1]                                    # (32, 1)
    w2s = params['fc2_w'][:, 1:2]                                    # (32, 1)
    b2c = params['fc2_b'].reshape(H, 1)                              # (32, 1)
    gammac = params['bn_gamma'].reshape(H, 1)                        # (32, 1)
    betac = params['bn_beta'].reshape(H, 1)                          # (32, 1)
    wqkv = jnp.concatenate([params['wq'], params['wk'], params['wv']], axis=0)   # (96, 32)
    bqkv = jnp.concatenate([params['bq'], params['bk'], params['bv']], axis=1).reshape(3 * H, 1)
    w3 = params['w3']                                                # (1, 32)

    vmem = pl.BlockSpec(memory_space=pltpu.MemorySpace.VMEM)
    smem = pl.BlockSpec(memory_space=pltpu.MemorySpace.SMEM)

    # --- kernel 1: fc / fc2 / BN / fused QKV / fc3-folded V  (tiny, no grid)
    qt, kt, vw = pl.pallas_call(
        prep_kernel,
        out_shape=(jax.ShapeDtypeStruct((C, H, D), jnp.float32),     # q^T
                   jax.ShapeDtypeStruct((C, H, D), jnp.float32),     # k^T
                   jax.ShapeDtypeStruct((C, 1, D), jnp.float32)),    # vw
        in_specs=[vmem, vmem, smem, smem,
                  vmem, vmem, vmem, vmem, vmem,
                  vmem, vmem, vmem],
        out_specs=(vmem, vmem, vmem),
        compiler_params=pltpu.CompilerParams(vmem_limit_bytes=32 * 1024 * 1024),
    )(proto, supp, params['fc_w'], params['fc_b'],
      w2p, w2s, b2c, gammac, betac, wqkv, bqkv, w3)

    # --- kernel 2: per-class attention (only one (D,D) score tile resident)
    proto3 = proto.reshape(C, 1, D)
    out = pl.pallas_call(
        attn_kernel,
        out_shape=jax.ShapeDtypeStruct((C, 1, D), jnp.float32),
        grid=(C,),
        in_specs=[
            pl.BlockSpec((1, 1, D), lambda c: (c, 0, 0)),            # proto
            pl.BlockSpec((1, H, D), lambda c: (c, 0, 0)),            # q^T
            pl.BlockSpec((1, H, D), lambda c: (c, 0, 0)),            # k^T
            pl.BlockSpec((1, 1, D), lambda c: (c, 0, 0)),            # vw
            pl.BlockSpec((1, 1), lambda c: (0, 0),
                         memory_space=pltpu.MemorySpace.SMEM),       # b3
        ],
        out_specs=pl.BlockSpec((1, 1, D), lambda c: (c, 0, 0)),
        compiler_params=pltpu.CompilerParams(
            dimension_semantics=("parallel",),
            vmem_limit_bytes=64 * 1024 * 1024),
        cost_estimate=pl.CostEstimate(
            flops=2 * C * D * D * (H + 1),
            transcendentals=C * D * D,
            bytes_accessed=4 * C * D * (2 * H + 3)),
    )(proto3, qt, kt, vw, params['b3'])

    return out.reshape(C, D)


def reference_forward(proto_feat, support_feat, params, n_support=5):
    """Pure-JAX mirror of the PyTorch forward (training-mode BatchNorm)."""
    hp = jax.lax.Precision.HIGHEST
    C, D = proto_feat.shape
    supp = support_feat.reshape(C, n_support, D)
    suppl = jnp.einsum('s,csd->cd', params['fc_w'][0], supp, precision=hp) + params['fc_b'][0, 0]
    p2s = jnp.stack([proto_feat, suppl], axis=1)                        # (C, 2, D)
    pre = (jnp.einsum('oi,cid->cod', params['fc2_w'], p2s, precision=hp)
           + params['fc2_b'][0][None, :, None])                         # (C, 32, D)
    mean = jnp.mean(pre, axis=(0, 2), keepdims=True)
    var = jnp.mean((pre - mean) ** 2, axis=(0, 2), keepdims=True)
    xhat = (pre - mean) / jnp.sqrt(var + EPS)
    fusion = jax.nn.relu(xhat * params['bn_gamma'][0][None, :, None]
                         + params['bn_beta'][0][None, :, None])
    fusion = jnp.transpose(fusion, (0, 2, 1))                           # (C, D, 32)

    def lin_relu(x, w, b):
        return jax.nn.relu(jnp.einsum('cdh,oh->cdo', x, w, precision=hp) + b)

    q = lin_relu(fusion, params['wq'], params['bq'])
    k = lin_relu(fusion, params['wk'], params['bk'])
    v = lin_relu(fusion, params['wv'], params['bv'])
    scores = jnp.einsum('cdh,ceh->cde', q, k, precision=hp)
    attn = jax.nn.softmax(scores, axis=2)
    v_hat = jnp.einsum('cde,ceh->cdh', attn, v, precision=hp)
    refine = jnp.squeeze(jnp.einsum('cdh,oh->cdo', v_hat, params['w3'], precision=hp),
                         axis=-1) + params['b3'][0, 0]
    return proto_feat + refine


if __name__ == "__main__":
    # Enrich_proto(n_way=4, k_shot=5, queries=3, emb_dim=128)
    # (k_shot must be 5 to match Conv1d(5, 1, 1); emb_dim reduced from 1024 for the demo)
    n_way, k_shot, queries, emb_dim = 4, 5, 3, 128

    key = jax.random.PRNGKey(0)
    kp, k1, k2 = jax.random.split(key, 3)
    params = init_params(kp, n_support=k_shot)
    proto_feat = jax.random.normal(k1, (n_way, emb_dim), jnp.float32)
    support_feat = jax.random.normal(k2, (n_way * k_shot, emb_dim), jnp.float32)

    out = enrich_proto_forward(proto_feat, support_feat, params, n_support=k_shot)
    out = jax.block_until_ready(out)

    ref = reference_forward(proto_feat, support_feat, params, n_support=k_shot)
    assert out.shape == (n_way, emb_dim)
    err = float(jnp.max(jnp.abs(out - ref)))
    # bf16 MXU inputs for the score / PV matmuls -> slightly looser tolerance.
    assert jnp.allclose(out, ref, rtol=3e-2, atol=3e-2), f"max abs err {err}"

    print("KERNEL_OK")
</pallas_src>

<mosaic_0001>
module attributes {stable_mosaic.version = 11 : i64} {
  func.func @prep_kernel(%arg0: memref<4x128xf32, #tpu.memory_space<vmem>>, %arg1: memref<5x4x128xf32, #tpu.memory_space<vmem>>, %arg2: memref<1x5xf32, #tpu.memory_space<smem>>, %arg3: memref<1x1xf32, #tpu.memory_space<smem>>, %arg4: memref<32x1xf32, #tpu.memory_space<vmem>>, %arg5: memref<32x1xf32, #tpu.memory_space<vmem>>, %arg6: memref<32x1xf32, #tpu.memory_space<vmem>>, %arg7: memref<32x1xf32, #tpu.memory_space<vmem>>, %arg8: memref<32x1xf32, #tpu.memory_space<vmem>>, %arg9: memref<96x32xf32, #tpu.memory_space<vmem>>, %arg10: memref<96x1xf32, #tpu.memory_space<vmem>>, %arg11: memref<1x32xf32, #tpu.memory_space<vmem>>, %arg12: memref<4x32x128xf32, #tpu.memory_space<vmem>>, %arg13: memref<4x32x128xf32, #tpu.memory_space<vmem>>, %arg14: memref<4x1x128xf32, #tpu.memory_space<vmem>>) attributes {dimension_semantics = [], scalar_prefetch = 0 : i64, scratch_operands = 0 : i64, tpu.core_type = #tpu.core_type<tc>} {
    %c0 = arith.constant 0 : index
    %c0_0 = arith.constant 0 : index
    %0 = vector.load %arg0[%c0, %c0_0] : memref<4x128xf32, #tpu.memory_space<vmem>>, vector<4x128xf32>
    %cst = arith.constant 0.000000e+00 : f32
    %1 = vector.broadcast %cst : f32 to vector<4x128xf32>
    %c0_1 = arith.constant 0 : index
    %c0_2 = arith.constant 0 : index
    %c0_3 = arith.constant 0 : index
    %2 = vector.load %arg1[%c0_1, %c0_2, %c0_3] : memref<5x4x128xf32, #tpu.memory_space<vmem>>, vector<1x4x128xf32>
    %3 = vector.shape_cast %2 : vector<1x4x128xf32> to vector<4x128xf32>
    %c0_4 = arith.constant 0 : index
    %c0_5 = arith.constant 0 : index
    %4 = memref.load %arg2[%c0_4, %c0_5] : memref<1x5xf32, #tpu.memory_space<smem>>
    %5 = vector.broadcast %4 : f32 to vector<4x128xf32>
    %6 = arith.mulf %3, %5 : vector<4x128xf32>
    %7 = arith.addf %1, %6 : vector<4x128xf32>
    %c1 = arith.constant 1 : index
    %c0_6 = arith.constant 0 : index
    %c0_7 = arith.constant 0 : index
    %8 = vector.load %arg1[%c1, %c0_6, %c0_7] : memref<5x4x128xf32, #tpu.memory_space<vmem>>, vector<1x4x128xf32>
    %9 = vector.shape_cast %8 : vector<1x4x128xf32> to vector<4x128xf32>
    %c0_8 = arith.constant 0 : index
    %c1_9 = arith.constant 1 : index
    %10 = memref.load %arg2[%c0_8, %c1_9] : memref<1x5xf32, #tpu.memory_space<smem>>
    %11 = vector.broadcast %10 : f32 to vector<4x128xf32>
    %12 = arith.mulf %9, %11 : vector<4x128xf32>
    %13 = arith.addf %7, %12 : vector<4x128xf32>
    %c2 = arith.constant 2 : index
    %c0_10 = arith.constant 0 : index
    %c0_11 = arith.constant 0 : index
    %14 = vector.load %arg1[%c2, %c0_10, %c0_11] : memref<5x4x128xf32, #tpu.memory_space<vmem>>, vector<1x4x128xf32>
    %15 = vector.shape_cast %14 : vector<1x4x128xf32> to vector<4x128xf32>
    %c0_12 = arith.constant 0 : index
    %c2_13 = arith.constant 2 : index
    %16 = memref.load %arg2[%c0_12, %c2_13] : memref<1x5xf32, #tpu.memory_space<smem>>
    %17 = vector.broadcast %16 : f32 to vector<4x128xf32>
    %18 = arith.mulf %15, %17 : vector<4x128xf32>
    %19 = arith.addf %13, %18 : vector<4x128xf32>
    %c3 = arith.constant 3 : index
    %c0_14 = arith.constant 0 : index
    %c0_15 = arith.constant 0 : index
    %20 = vector.load %arg1[%c3, %c0_14, %c0_15] : memref<5x4x128xf32, #tpu.memory_space<vmem>>, vector<1x4x128xf32>
    %21 = vector.shape_cast %20 : vector<1x4x128xf32> to vector<4x128xf32>
    %c0_16 = arith.constant 0 : index
    %c3_17 = arith.constant 3 : index
    %22 = memref.load %arg2[%c0_16, %c3_17] : memref<1x5xf32, #tpu.memory_space<smem>>
    %23 = vector.broadcast %22 : f32 to vector<4x128xf32>
    %24 = arith.mulf %21, %23 : vector<4x128xf32>
    %25 = arith.addf %19, %24 : vector<4x128xf32>
    %c4 = arith.constant 4 : index
    %c0_18 = arith.constant 0 : index
    %c0_19 = arith.constant 0 : index
    %26 = vector.load %arg1[%c4, %c0_18, %c0_19] : memref<5x4x128xf32, #tpu.memory_space<vmem>>, vector<1x4x128xf32>
    %27 = vector.shape_cast %26 : vector<1x4x128xf32> to vector<4x128xf32>
    %c0_20 = arith.constant 0 : index
    %c4_21 = arith.constant 4 : index
    %28 = memref.load %arg2[%c0_20, %c4_21] : memref<1x5xf32, #tpu.memory_space<smem>>
    %29 = vector.broadcast %28 : f32 to vector<4x128xf32>
    %30 = arith.mulf %27, %29 : vector<4x128xf32>
    %31 = arith.addf %25, %30 : vector<4x128xf32>
    %c0_22 = arith.constant 0 : index
    %c0_23 = arith.constant 0 : index
    %32 = memref.load %arg3[%c0_22, %c0_23] : memref<1x1xf32, #tpu.memory_space<smem>>
    %33 = vector.broadcast %32 : f32 to vector<4x128xf32>
    %34 = arith.addf %31, %33 : vector<4x128xf32>
    %35 = vector.shape_cast %0 : vector<4x128xf32> to vector<4x1x128xf32>
    %c0_24 = arith.constant 0 : index
    %c0_25 = arith.constant 0 : index
    %36 = vector.load %arg4[%c0_24, %c0_25] : memref<32x1xf32, #tpu.memory_space<vmem>>, vector<32x1xf32>
    %37 = vector.shape_cast %36 : vector<32x1xf32> to vector<1x32x1xf32>
    %38 = vector.broadcast %35 : vector<4x1x128xf32> to vector<4x32x128xf32>
    %39 = vector.broadcast %37 : vector<1x32x1xf32> to vector<4x32x128xf32>
    %40 = arith.mulf %38, %39 : vector<4x32x128xf32>
    %41 = vector.shape_cast %34 : vector<4x128xf32> to vector<4x1x128xf32>
    %c0_26 = arith.constant 0 : index
    %c0_27 = arith.constant 0 : index
    %42 = vector.load %arg5[%c0_26, %c0_27] : memref<32x1xf32, #tpu.memory_space<vmem>>, vector<32x1xf32>
    %43 = vector.shape_cast %42 : vector<32x1xf32> to vector<1x32x1xf32>
    %44 = vector.broadcast %41 : vector<4x1x128xf32> to vector<4x32x128xf32>
    %45 = vector.broadcast %43 : vector<1x32x1xf32> to vector<4x32x128xf32>
    %46 = arith.mulf %44, %45 : vector<4x32x128xf32>
    %47 = arith.addf %40, %46 : vector<4x32x128xf32>
    %c0_28 = arith.constant 0 : index
    %c0_29 = arith.constant 0 : index
    %48 = vector.load %arg6[%c0_28, %c0_29] : memref<32x1xf32, #tpu.memory_space<vmem>>, vector<32x1xf32>
    %49 = vector.shape_cast %48 : vector<32x1xf32> to vector<1x32x1xf32>
    %50 = vector.broadcast %49 : vector<1x32x1xf32> to vector<4x32x128xf32>
    %51 = arith.addf %47, %50 : vector<4x32x128xf32>
    %cst_30 = arith.constant dense<0.000000e+00> : vector<32xf32>
    %52 = vector.multi_reduction <add>, %51, %cst_30 [0, 2] : vector<4x32x128xf32> to vector<32xf32>
    %53 = vector.shape_cast %52 : vector<32xf32> to vector<1x32x1xf32>
    %cst_31 = arith.constant 5.120000e+02 : f32
    %54 = vector.broadcast %cst_31 : f32 to vector<1x32x1xf32>
    %55 = arith.divf %53, %54 : vector<1x32x1xf32>
    %56 = vector.broadcast %55 : vector<1x32x1xf32> to vector<4x32x128xf32>
    %57 = arith.subf %51, %56 : vector<4x32x128xf32>
    %58 = arith.mulf %57, %57 : vector<4x32x128xf32>
    %cst_32 = arith.constant dense<0.000000e+00> : vector<32xf32>
    %59 = vector.multi_reduction <add>, %58, %cst_32 [0, 2] : vector<4x32x128xf32> to vector<32xf32>
    %60 = vector.shape_cast %59 : vector<32xf32> to vector<1x32x1xf32>
    %cst_33 = arith.constant 5.120000e+02 : f32
    %61 = vector.broadcast %cst_33 : f32 to vector<1x32x1xf32>
    %62 = arith.divf %60, %61 : vector<1x32x1xf32>
    %63 = vector.broadcast %55 : vector<1x32x1xf32> to vector<4x32x128xf32>
    %64 = arith.subf %51, %63 : vector<4x32x128xf32>
    %cst_34 = arith.constant 9.99999974E-6 : f32
    %65 = vector.broadcast %cst_34 : f32 to vector<1x32x1xf32>
    %66 = arith.addf %62, %65 : vector<1x32x1xf32>
    %67 = math.rsqrt %66 : vector<1x32x1xf32>
    %68 = vector.broadcast %67 : vector<1x32x1xf32> to vector<4x32x128xf32>
    %69 = arith.mulf %64, %68 : vector<4x32x128xf32>
    %c0_35 = arith.constant 0 : index
    %c0_36 = arith.constant 0 : index
    %70 = vector.load %arg7[%c0_35, %c0_36] : memref<32x1xf32, #tpu.memory_space<vmem>>, vector<32x1xf32>
    %71 = vector.shape_cast %70 : vector<32x1xf32> to vector<1x32x1xf32>
    %72 = vector.broadcast %71 : vector<1x32x1xf32> to vector<4x32x128xf32>
    %73 = arith.mulf %69, %72 : vector<4x32x128xf32>
    %c0_37 = arith.constant 0 : index
    %c0_38 = arith.constant 0 : index
    %74 = vector.load %arg8[%c0_37, %c0_38] : memref<32x1xf32, #tpu.memory_space<vmem>>, vector<32x1xf32>
    %75 = vector.shape_cast %74 : vector<32x1xf32> to vector<1x32x1xf32>
    %76 = vector.broadcast %75 : vector<1x32x1xf32> to vector<4x32x128xf32>
    %77 = arith.addf %73, %76 : vector<4x32x128xf32>
    %cst_39 = arith.constant 0.000000e+00 : f32
    %78 = vector.broadcast %cst_39 : f32 to vector<4x32x128xf32>
    %79 = arith.maximumf %77, %78 : vector<4x32x128xf32>
    %c0_40 = arith.constant 0 : index
    %c0_41 = arith.constant 0 : index
    %80 = vector.load %arg9[%c0_40, %c0_41] : memref<96x32xf32, #tpu.memory_space<vmem>>, vector<96x32xf32>
    %c0_42 = arith.constant 0 : index
    %c0_43 = arith.constant 0 : index
    %81 = vector.load %arg10[%c0_42, %c0_43] : memref<96x1xf32, #tpu.memory_space<vmem>>, vector<96x1xf32>
    %c0_44 = arith.constant 0 : index
    %c0_45 = arith.constant 0 : index
    %82 = vector.load %arg11[%c0_44, %c0_45] : memref<1x32xf32, #tpu.memory_space<vmem>>, vector<1x32xf32>
    %83 = vector.extract_strided_slice %79 {offsets = [0, 0, 0], sizes = [1, 32, 128], strides = [1, 1, 1]} : vector<4x32x128xf32> to vector<1x32x128xf32>
    %84 = vector.shape_cast %83 : vector<1x32x128xf32> to vector<32x128xf32>
    %cst_46 = arith.constant dense<0.000000e+00> : vector<96x128xf32>
    %85 = tpu.matmul %80, %84, %cst_46 {dimension_numbers = #tpu.dot_dimension_numbers<[1], [0], [0], [1], [0, 0, 1, 1], [], []>} : vector<96x32xf32>, vector<32x128xf32>, vector<96x128xf32> -> vector<96x128xf32>
    %86 = vector.broadcast %81 : vector<96x1xf32> to vector<96x128xf32>
    %87 = arith.addf %85, %86 : vector<96x128xf32>
    %cst_47 = arith.constant 0.000000e+00 : f32
    %88 = vector.broadcast %cst_47 : f32 to vector<96x128xf32>
    %89 = arith.maximumf %87, %88 : vector<96x128xf32>
    %90 = vector.extract_strided_slice %89 {offsets = [0, 0], sizes = [32, 128], strides = [1, 1]} : vector<96x128xf32> to vector<32x128xf32>
    %c0_48 = arith.constant 0 : index
    %c0_49 = arith.constant 0 : index
    %c0_50 = arith.constant 0 : index
    %91 = vector.load %arg12[%c0_48, %c0_49, %c0_50] : memref<4x32x128xf32, #tpu.memory_space<vmem>>, vector<1x32x128xf32>
    %92 = vector.shape_cast %91 : vector<1x32x128xf32> to vector<32x128xf32>
    %93 = vector.shape_cast %90 : vector<32x128xf32> to vector<1x32x128xf32>
    tpu.vector_store %arg12[%c0_48, %c0_49, %c0_50], %93 {strides = array<i32>} : memref<4x32x128xf32, #tpu.memory_space<vmem>>, vector<1x32x128xf32>,
    %94 = vector.extract_strided_slice %89 {offsets = [32, 0], sizes = [32, 128], strides = [1, 1]} : vector<96x128xf32> to vector<32x128xf32>
    %c0_51 = arith.constant 0 : index
    %c0_52 = arith.constant 0 : index
    %c0_53 = arith.constant 0 : index
    %95 = vector.load %arg13[%c0_51, %c0_52, %c0_53] : memref<4x32x128xf32, #tpu.memory_space<vmem>>, vector<1x32x128xf32>
    %96 = vector.shape_cast %95 : vector<1x32x128xf32> to vector<32x128xf32>
    %97 = vector.shape_cast %94 : vector<32x128xf32> to vector<1x32x128xf32>
    tpu.vector_store %arg13[%c0_51, %c0_52, %c0_53], %97 {strides = array<i32>} : memref<4x32x128xf32, #tpu.memory_space<vmem>>, vector<1x32x128xf32>,
    %98 = vector.extract_strided_slice %89 {offsets = [64, 0], sizes = [32, 128], strides = [1, 1]} : vector<96x128xf32> to vector<32x128xf32>
    %cst_54 = arith.constant dense<0.000000e+00> : vector<1x128xf32>
    %99 = tpu.matmul %82, %98, %cst_54 {dimension_numbers = #tpu.dot_dimension_numbers<[1], [0], [0], [1], [0, 0, 1, 1], [], []>} : vector<1x32xf32>, vector<32x128xf32>, vector<1x128xf32> -> vector<1x128xf32>
    %c0_55 = arith.constant 0 : index
    %c0_56 = arith.constant 0 : index
    %c0_57 = arith.constant 0 : index
    %100 = vector.load %arg14[%c0_55, %c0_56, %c0_57] : memref<4x1x128xf32, #tpu.memory_space<vmem>>, vector<1x1x128xf32>
    %101 = vector.shape_cast %100 : vector<1x1x128xf32> to vector<1x128xf32>
    %102 = vector.shape_cast %99 : vector<1x128xf32> to vector<1x1x128xf32>
    tpu.vector_store %arg14[%c0_55, %c0_56, %c0_57], %102 {strides = array<i32>} : memref<4x1x128xf32, #tpu.memory_space<vmem>>, vector<1x1x128xf32>,
    %103 = vector.extract_strided_slice %79 {offsets = [1, 0, 0], sizes = [1, 32, 128], strides = [1, 1, 1]} : vector<4x32x128xf32> to vector<1x32x128xf32>
    %104 = vector.shape_cast %103 : vector<1x32x128xf32> to vector<32x128xf32>
    %cst_58 = arith.constant dense<0.000000e+00> : vector<96x128xf32>
    %105 = tpu.matmul %80, %104, %cst_58 {dimension_numbers = #tpu.dot_dimension_numbers<[1], [0], [0], [1], [0, 0, 1, 1], [], []>} : vector<96x32xf32>, vector<32x128xf32>, vector<96x128xf32> -> vector<96x128xf32>
    %106 = vector.broadcast %81 : vector<96x1xf32> to vector<96x128xf32>
    %107 = arith.addf %105, %106 : vector<96x128xf32>
    %cst_59 = arith.constant 0.000000e+00 : f32
    %108 = vector.broadcast %cst_59 : f32 to vector<96x128xf32>
    %109 = arith.maximumf %107, %108 : vector<96x128xf32>
    %110 = vector.extract_strided_slice %109 {offsets = [0, 0], sizes = [32, 128], strides = [1, 1]} : vector<96x128xf32> to vector<32x128xf32>
    %c1_60 = arith.constant 1 : index
    %c0_61 = arith.constant 0 : index
    %c0_62 = arith.constant 0 : index
    %111 = vector.load %arg12[%c1_60, %c0_61, %c0_62] : memref<4x32x128xf32, #tpu.memory_space<vmem>>, vector<1x32x128xf32>
    %112 = vector.shape_cast %111 : vector<1x32x128xf32> to vector<32x128xf32>
    %113 = vector.shape_cast %110 : vector<32x128xf32> to vector<1x32x128xf32>
    tpu.vector_store %arg12[%c1_60, %c0_61, %c0_62], %113 {strides = array<i32>} : memref<4x32x128xf32, #tpu.memory_space<vmem>>, vector<1x32x128xf32>,
    %114 = vector.extract_strided_slice %109 {offsets = [32, 0], sizes = [32, 128], strides = [1, 1]} : vector<96x128xf32> to vector<32x128xf32>
    %c1_63 = arith.constant 1 : index
    %c0_64 = arith.constant 0 : index
    %c0_65 = arith.constant 0 : index
    %115 = vector.load %arg13[%c1_63, %c0_64, %c0_65] : memref<4x32x128xf32, #tpu.memory_space<vmem>>, vector<1x32x128xf32>
    %116 = vector.shape_cast %115 : vector<1x32x128xf32> to vector<32x128xf32>
    %117 = vector.shape_cast %114 : vector<32x128xf32> to vector<1x32x128xf32>
    tpu.vector_store %arg13[%c1_63, %c0_64, %c0_65], %117 {strides = array<i32>} : memref<4x32x128xf32, #tpu.memory_space<vmem>>, vector<1x32x128xf32>,
    %118 = vector.extract_strided_slice %109 {offsets = [64, 0], sizes = [32, 128], strides = [1, 1]} : vector<96x128xf32> to vector<32x128xf32>
    %cst_66 = arith.constant dense<0.000000e+00> : vector<1x128xf32>
    %119 = tpu.matmul %82, %118, %cst_66 {dimension_numbers = #tpu.dot_dimension_numbers<[1], [0], [0], [1], [0, 0, 1, 1], [], []>} : vector<1x32xf32>, vector<32x128xf32>, vector<1x128xf32> -> vector<1x128xf32>
    %c1_67 = arith.constant 1 : index
    %c0_68 = arith.constant 0 : index
    %c0_69 = arith.constant 0 : index
    %120 = vector.load %arg14[%c1_67, %c0_68, %c0_69] : memref<4x1x128xf32, #tpu.memory_space<vmem>>, vector<1x1x128xf32>
    %121 = vector.shape_cast %120 : vector<1x1x128xf32> to vector<1x128xf32>
    %122 = vector.shape_cast %119 : vector<1x128xf32> to vector<1x1x128xf32>
    tpu.vector_store %arg14[%c1_67, %c0_68, %c0_69], %122 {strides = array<i32>} : memref<4x1x128xf32, #tpu.memory_space<vmem>>, vector<1x1x128xf32>,
    %123 = vector.extract_strided_slice %79 {offsets = [2, 0, 0], sizes = [1, 32, 128], strides = [1, 1, 1]} : vector<4x32x128xf32> to vector<1x32x128xf32>
    %124 = vector.shape_cast %123 : vector<1x32x128xf32> to vector<32x128xf32>
    %cst_70 = arith.constant dense<0.000000e+00> : vector<96x128xf32>
    %125 = tpu.matmul %80, %124, %cst_70 {dimension_numbers = #tpu.dot_dimension_numbers<[1], [0], [0], [1], [0, 0, 1, 1], [], []>} : vector<96x32xf32>, vector<32x128xf32>, vector<96x128xf32> -> vector<96x128xf32>
    %126 = vector.broadcast %81 : vector<96x1xf32> to vector<96x128xf32>
    %127 = arith.addf %125, %126 : vector<96x128xf32>
    %cst_71 = arith.constant 0.000000e+00 : f32
    %128 = vector.broadcast %cst_71 : f32 to vector<96x128xf32>
    %129 = arith.maximumf %127, %128 : vector<96x128xf32>
    %130 = vector.extract_strided_slice %129 {offsets = [0, 0], sizes = [32, 128], strides = [1, 1]} : vector<96x128xf32> to vector<32x128xf32>
    %c2_72 = arith.constant 2 : index
    %c0_73 = arith.constant 0 : index
    %c0_74 = arith.constant 0 : index
    %131 = vector.load %arg12[%c2_72, %c0_73, %c0_74] : memref<4x32x128xf32, #tpu.memory_space<vmem>>, vector<1x32x128xf32>
    %132 = vector.shape_cast %131 : vector<1x32x128xf32> to vector<32x128xf32>
    %133 = vector.shape_cast %130 : vector<32x128xf32> to vector<1x32x128xf32>
    tpu.vector_store %arg12[%c2_72, %c0_73, %c0_74], %133 {strides = array<i32>} : memref<4x32x128xf32, #tpu.memory_space<vmem>>, vector<1x32x128xf32>,
    %134 = vector.extract_strided_slice %129 {offsets = [32, 0], sizes = [32, 128], strides = [1, 1]} : vector<96x128xf32> to vector<32x128xf32>
    %c2_75 = arith.constant 2 : index
    %c0_76 = arith.constant 0 : index
    %c0_77 = arith.constant 0 : index
    %135 = vector.load %arg13[%c2_75, %c0_76, %c0_77] : memref<4x32x128xf32, #tpu.memory_space<vmem>>, vector<1x32x128xf32>
    %136 = vector.shape_cast %135 : vector<1x32x128xf32> to vector<32x128xf32>
    %137 = vector.shape_cast %134 : vector<32x128xf32> to vector<1x32x128xf32>
    tpu.vector_store %arg13[%c2_75, %c0_76, %c0_77], %137 {strides = array<i32>} : memref<4x32x128xf32, #tpu.memory_space<vmem>>, vector<1x32x128xf32>,
    %138 = vector.extract_strided_slice %129 {offsets = [64, 0], sizes = [32, 128], strides = [1, 1]} : vector<96x128xf32> to vector<32x128xf32>
    %cst_78 = arith.constant dense<0.000000e+00> : vector<1x128xf32>
    %139 = tpu.matmul %82, %138, %cst_78 {dimension_numbers = #tpu.dot_dimension_numbers<[1], [0], [0], [1], [0, 0, 1, 1], [], []>} : vector<1x32xf32>, vector<32x128xf32>, vector<1x128xf32> -> vector<1x128xf32>
    %c2_79 = arith.constant 2 : index
    %c0_80 = arith.constant 0 : index
    %c0_81 = arith.constant 0 : index
    %140 = vector.load %arg14[%c2_79, %c0_80, %c0_81] : memref<4x1x128xf32, #tpu.memory_space<vmem>>, vector<1x1x128xf32>
    %141 = vector.shape_cast %140 : vector<1x1x128xf32> to vector<1x128xf32>
    %142 = vector.shape_cast %139 : vector<1x128xf32> to vector<1x1x128xf32>
    tpu.vector_store %arg14[%c2_79, %c0_80, %c0_81], %142 {strides = array<i32>} : memref<4x1x128xf32, #tpu.memory_space<vmem>>, vector<1x1x128xf32>,
    %143 = vector.extract_strided_slice %79 {offsets = [3, 0, 0], sizes = [1, 32, 128], strides = [1, 1, 1]} : vector<4x32x128xf32> to vector<1x32x128xf32>
    %144 = vector.shape_cast %143 : vector<1x32x128xf32> to vector<32x128xf32>
    %cst_82 = arith.constant dense<0.000000e+00> : vector<96x128xf32>
    %145 = tpu.matmul %80, %144, %cst_82 {dimension_numbers = #tpu.dot_dimension_numbers<[1], [0], [0], [1], [0, 0, 1, 1], [], []>} : vector<96x32xf32>, vector<32x128xf32>, vector<96x128xf32> -> vector<96x128xf32>
    %146 = vector.broadcast %81 : vector<96x1xf32> to vector<96x128xf32>
    %147 = arith.addf %145, %146 : vector<96x128xf32>
    %cst_83 = arith.constant 0.000000e+00 : f32
    %148 = vector.broadcast %cst_83 : f32 to vector<96x128xf32>
    %149 = arith.maximumf %147, %148 : vector<96x128xf32>
    %150 = vector.extract_strided_slice %149 {offsets = [0, 0], sizes = [32, 128], strides = [1, 1]} : vector<96x128xf32> to vector<32x128xf32>
    %c3_84 = arith.constant 3 : index
    %c0_85 = arith.constant 0 : index
    %c0_86 = arith.constant 0 : index
    %151 = vector.load %arg12[%c3_84, %c0_85, %c0_86] : memref<4x32x128xf32, #tpu.memory_space<vmem>>, vector<1x32x128xf32>
    %152 = vector.shape_cast %151 : vector<1x32x128xf32> to vector<32x128xf32>
    %153 = vector.shape_cast %150 : vector<32x128xf32> to vector<1x32x128xf32>
    tpu.vector_store %arg12[%c3_84, %c0_85, %c0_86], %153 {strides = array<i32>} : memref<4x32x128xf32, #tpu.memory_space<vmem>>, vector<1x32x128xf32>,
    %154 = vector.extract_strided_slice %149 {offsets = [32, 0], sizes = [32, 128], strides = [1, 1]} : vector<96x128xf32> to vector<32x128xf32>
    %c3_87 = arith.constant 3 : index
    %c0_88 = arith.constant 0 : index
    %c0_89 = arith.constant 0 : index
    %155 = vector.load %arg13[%c3_87, %c0_88, %c0_89] : memref<4x32x128xf32, #tpu.memory_space<vmem>>, vector<1x32x128xf32>
    %156 = vector.shape_cast %155 : vector<1x32x128xf32> to vector<32x128xf32>
    %157 = vector.shape_cast %154 : vector<32x128xf32> to vector<1x32x128xf32>
    tpu.vector_store %arg13[%c3_87, %c0_88, %c0_89], %157 {strides = array<i32>} : memref<4x32x128xf32, #tpu.memory_space<vmem>>, vector<1x32x128xf32>,
    %158 = vector.extract_strided_slice %149 {offsets = [64, 0], sizes = [32, 128], strides = [1, 1]} : vector<96x128xf32> to vector<32x128xf32>
    %cst_90 = arith.constant dense<0.000000e+00> : vector<1x128xf32>
    %159 = tpu.matmul %82, %158, %cst_90 {dimension_numbers = #tpu.dot_dimension_numbers<[1], [0], [0], [1], [0, 0, 1, 1], [], []>} : vector<1x32xf32>, vector<32x128xf32>, vector<1x128xf32> -> vector<1x128xf32>
    %c3_91 = arith.constant 3 : index
    %c0_92 = arith.constant 0 : index
    %c0_93 = arith.constant 0 : index
    %160 = vector.load %arg14[%c3_91, %c0_92, %c0_93] : memref<4x1x128xf32, #tpu.memory_space<vmem>>, vector<1x1x128xf32>
    %161 = vector.shape_cast %160 : vector<1x1x128xf32> to vector<1x128xf32>
    %162 = vector.shape_cast %159 : vector<1x128xf32> to vector<1x1x128xf32>
    tpu.vector_store %arg14[%c3_91, %c0_92, %c0_93], %162 {strides = array<i32>} : memref<4x1x128xf32, #tpu.memory_space<vmem>>, vector<1x1x128xf32>,
    return
  }
}

</mosaic_0001>

<llo_original>
// kernel: tpu_custom_call.1
$region0: #{tpu_custom_call.1}
  #allocation0 [shape = 'u32[]', space=smem, size = 0x4, offset = 0x4, fixed_abs, tag = 'smem constant byte address 0x4 - core index']
  #allocation1 [shape = 'u32[144,128]{1,0:T(1,128)}', space=vmem, size = 0x12000, scoped, tag = 'internal scratch']
  #allocation2 [shape = 'f32[1,1]{1,0:T(1,128)S(6)}', space=smem, size = 0x200, scoped, tag = 'scoped memory for tpu_custom_call.1']
  %s0 = inlined_call_operand.vmem [shape: f32[4,128], index: 0, kind: input, shape index: {}]
  %s1 = inlined_call_operand.vmem [shape: f32[5,4,128], index: 1, kind: input, shape index: {}]
  %s2 = inlined_call_operand.vmem [shape: f32[1,5], index: 2, kind: input, shape index: {}]
  %s3 = inlined_call_operand.<no memory space> [shape: f32[1,1], index: 3, kind: input, shape index: {}]
  %s4 = inlined_call_operand.vmem [shape: f32[32,1], index: 4, kind: input, shape index: {}]
  %s5 = inlined_call_operand.vmem [shape: f32[32,1], index: 5, kind: input, shape index: {}]
  %s6 = inlined_call_operand.vmem [shape: f32[32,1], index: 6, kind: input, shape index: {}]
  %s7 = inlined_call_operand.vmem [shape: f32[32,1], index: 7, kind: input, shape index: {}]
  %s8 = inlined_call_operand.vmem [shape: f32[32,1], index: 8, kind: input, shape index: {}]
  %s9 = inlined_call_operand.vmem [shape: f32[96,32], index: 9, kind: input, shape index: {}]
  %s10 = inlined_call_operand.vmem [shape: f32[96,1], index: 10, kind: input, shape index: {}]
  %s11 = inlined_call_operand.vmem [shape: f32[1,32], index: 11, kind: input, shape index: {}]
  %s12 = inlined_call_operand.hbm [shape: f32[4,32,128], index: 12, kind: output, shape index: {0}]
  %s13 = inlined_call_operand.hbm [shape: f32[4,32,128], index: 13, kind: output, shape index: {1}]
  %s14 = inlined_call_operand.hbm [shape: f32[4,1,128], index: 14, kind: output, shape index: {2}]
  %15 = xla_tuple %s12, %s13, %s14
  %s16 = sld [smem:[#allocation0]]
  $region78: #{tpu_custom_call.1} parent=0
    _
  %s18 = ssub.s32 1, %s16
  %s19 = scalar_select 0, %s18, %s16
  %20 = sst [smem:[#allocation2]] %s3
  $region1: #{tpu_custom_call.1} parent=0
    #allocation3 [shape = 'u8[512]{0}', space=smem, size = 0x200, scoped, tag = 'input window, operand 2, single buffered']
    #allocation4 [shape = 's32[1]{0}', space=sflag, size = 0x4, scoped, tag = 'scoped memory for tpu_custom_call.1']
    #allocation5 [shape = 's32[1]{0}', space=sflag, size = 0x4, scoped, tag = 'scoped memory for tpu_custom_call.1']
    #allocation6 [shape = 'u8[65536]{0}', space=vmem, size = 0x10000, scoped, tag = 'output window, operand 0, single buffered']
    #allocation7 [shape = 'u8[65536]{0}', space=vmem, size = 0x10000, scoped, tag = 'output window, operand 1, single buffered']
    #allocation8 [shape = 's32[1]{0}', space=sflag, size = 0x4, scoped, tag = 'scoped memory for tpu_custom_call.1']
    #allocation9 [shape = 'u8[2048]{0}', space=vmem, size = 0x800, scoped, tag = 'output window, operand 2, single buffered']
    %21 = vsyncpa [#allocation5], 0
    %22 = vsyncpa [#allocation4], 0
    %23 = vsyncpa [#allocation8], 0
    // Predicated region
    $region2: #{tpu_custom_call.1} parent=1 // pred_check
      _
    $region3: #{tpu_custom_call.1} parent=1 // pred_check_branch
      %25 = sbr.rel (0) target = $region5
    $region4: #{tpu_custom_call.1} parent=1 // pred_region
      _
    $region5: #{tpu_custom_call.1} parent=1 // pred_fallthru
      _
    // Predicated region
    $region6: #{tpu_custom_call.1} parent=1 // pred_check
      _
    $region7: #{tpu_custom_call.1} parent=1 // pred_check_branch
      %27 = sbr.rel (0) target = $region9
    $region8: #{tpu_custom_call.1} parent=1 // pred_region
      _
    $region9: #{tpu_custom_call.1} parent=1 // pred_fallthru
      _
    // Predicated region
    $region10: #{tpu_custom_call.1} parent=1 // pred_check
      _
    $region11: #{tpu_custom_call.1} parent=1 // pred_check_branch
      %29 = sbr.rel (0) target = $region13
    $region12: #{tpu_custom_call.1} parent=1 // pred_region
      %s31 = ssub.s32 16, 16
      %32 = vsyncadd [#allocation5], %s31
      %s34 = sshll.u32 %s2, 4
      %s35 = int_to_ptr.vmem [resolvable:$true] %s34
      %37 = dma.vmem_to_smem %s35, 16, [#allocation3], [#allocation5]
    $region13: #{tpu_custom_call.1} parent=1 // pred_fallthru
      _
    // Predicated region
    $region14: #{tpu_custom_call.1} parent=1 // pred_check
      _
    $region15: #{tpu_custom_call.1} parent=1 // pred_check_branch
      %39 = sbr.rel (0) target = $region17
    $region16: #{tpu_custom_call.1} parent=1 // pred_region
      _
    $region17: #{tpu_custom_call.1} parent=1 // pred_fallthru
      _
    // Predicated region
    $region18: #{tpu_custom_call.1} parent=1 // pred_check
      _
    $region19: #{tpu_custom_call.1} parent=1 // pred_check_branch
      %41 = sbr.rel (0) target = $region21
    $region20: #{tpu_custom_call.1} parent=1 // pred_region
      _
    $region21: #{tpu_custom_call.1} parent=1 // pred_fallthru
      _
    // Predicated region
    $region22: #{tpu_custom_call.1} parent=1 // pred_check
      _
    $region23: #{tpu_custom_call.1} parent=1 // pred_check_branch
      %43 = sbr.rel (0) target = $region25
    $region24: #{tpu_custom_call.1} parent=1 // pred_region
      _
    $region25: #{tpu_custom_call.1} parent=1 // pred_fallthru
      _
    // Predicated region
    $region26: #{tpu_custom_call.1} parent=1 // pred_check
      _
    $region27: #{tpu_custom_call.1} parent=1 // pred_check_branch
      %45 = sbr.rel (0) target = $region29
    $region28: #{tpu_custom_call.1} parent=1 // pred_region
      _
    $region29: #{tpu_custom_call.1} parent=1 // pred_fallthru
      _
    // Predicated region
    $region30: #{tpu_custom_call.1} parent=1 // pred_check
      _
    $region31: #{tpu_custom_call.1} parent=1 // pred_check_branch
      %47 = sbr.rel (0) target = $region33
    $region32: #{tpu_custom_call.1} parent=1 // pred_region
      _
    $region33: #{tpu_custom_call.1} parent=1 // pred_fallthru
      _
    // Predicated region
    $region34: #{tpu_custom_call.1} parent=1 // pred_check
      _
    $region35: #{tpu_custom_call.1} parent=1 // pred_check_branch
      %49 = sbr.rel (0) target = $region37
    $region36: #{tpu_custom_call.1} parent=1 // pred_region
      _
    $region37: #{tpu_custom_call.1} parent=1 // pred_fallthru
      _
    // Predicated region
    $region38: #{tpu_custom_call.1} parent=1 // pred_check
      _
    $region39: #{tpu_custom_call.1} parent=1 // pred_check_branch
      %51 = sbr.rel (0) target = $region41
    $region40: #{tpu_custom_call.1} parent=1 // pred_region
      _
    $region41: #{tpu_custom_call.1} parent=1 // pred_fallthru
      _
    // Predicated region
    $region42: #{tpu_custom_call.1} parent=1 // pred_check
      _
    $region43: #{tpu_custom_call.1} parent=1 // pred_check_branch
      %53 = sbr.rel (0) target = $region45
    $region44: #{tpu_custom_call.1} parent=1 // pred_region
      _
    $region45: #{tpu_custom_call.1} parent=1 // pred_fallthru
      _
    // Predicated region
    $region46: #{tpu_custom_call.1} parent=1 // pred_check
      _
    $region47: #{tpu_custom_call.1} parent=1 // pred_check_branch
      %55 = sbr.rel (0) target = $region49
    $region48: #{tpu_custom_call.1} parent=1 // pred_region
      _
    $region49: #{tpu_custom_call.1} parent=1 // pred_fallthru
      _
    // Predicated region
    $region50: #{tpu_custom_call.1} parent=1 // pred_check
      _
    $region51: #{tpu_custom_call.1} parent=1 // pred_check_branch
      %57 = sbr.rel (0) target = $region53
    $region52: #{tpu_custom_call.1} parent=1 // pred_region
      %58 = dma.done [#allocation5], 16
    $region53: #{tpu_custom_call.1} parent=1 // pred_fallthru
      _
    %59 = sfence
    %v60 = vld [vmem:[%s0] sm:$0xf]
    %v61 = vld [vmem:[%s1] sm:$0xf]
    %s62 = sld [smem:[#allocation3]]
    %v63 = vstv %s62
    %v64 = vmul.f32 %v61, %v63
    %v65 = vadd.f32 %v64, 0.0
    %s66 = scalar_lea.vmem %s1, 4
    %v67 = vld [vmem:[%s66] sm:$0xf]
    %s68 = sld [smem:[#allocation3 + $0x1]]
    %v69 = vstv %s68
    %v70 = vmul.f32 %v67, %v69
    %v71 = vadd.f32 %v65, %v70
    %s72 = scalar_lea.vmem %s1, 8
    %v73 = vld [vmem:[%s72] sm:$0xf]
    %s74 = sld [smem:[#allocation3 + $0x2]]
    %v75 = vstv %s74
    %v76 = vmul.f32 %v73, %v75
    %v77 = vadd.f32 %v71, %v76
    %s78 = scalar_lea.vmem %s1, 12
    %v79 = vld [vmem:[%s78] sm:$0xf]
    %s80 = sld [smem:[#allocation3 + $0x3]]
    %v81 = vstv %s80
    %v82 = vmul.f32 %v79, %v81
    %v83 = vadd.f32 %v77, %v82
    %s84 = scalar_lea.vmem %s1, 16
    %v85 = vld [vmem:[%s84] sm:$0xf]
    %s86 = sld [smem:[#allocation3 + $0x4]]
    %v87 = vstv %s86
    %v88 = vmul.f32 %v85, %v87
    %v89 = vadd.f32 %v83, %v88
    %s90 = sld [smem:[#allocation2]]
    %v91 = vstv %s90
    %v92 = vadd.f32 %v89, %v91
    %v95 = vunpack.c.l.s4 1966171168
    %v96 = vunpack.c.0.s8 %v95
    %v97 = vlaneseq
    %v98 = vshrl.u32 %v97, 7
    %v99 = vsub.s32 %v96, %v98
    %v100 = vrot.slane %v60, %v99
    %v101 = vcombine.high %v100, %v100
    %v103 = vunpack.c.l.s4 1966171168
    %v104 = vunpack.c.0.s8 %v103
    %v105 = vlaneseq
    %v106 = vshrl.u32 %v105, 7
    %v107 = vsub.s32 %v104, %v106
    %v108 = vrot.slane %v100, %v107
    %v110 = vunpack.c.l.s4 1966171168
    %v111 = vunpack.c.0.s8 %v110
    %v112 = vlaneseq
    %v113 = vshrl.u32 %v112, 7
    %v114 = vsub.s32 %v111, %v113
    %v115 = vrot.slane %v101, %v114
    %v116 = vcombine.high %v108, %v108
    %v117 = vcombine.high %v115, %v115
    %v118 = vld [vmem:[%s4] sm:$0xff]
    %v119 = vld [vmem:[%s4 + $0x8] sm:$0xff]
    %v120 = vld [vmem:[%s4 + $0x10] sm:$0xff]
    %v121 = vld [vmem:[%s4 + $0x18] sm:$0xff]
    %v122 = vlaneseq
    %v123 = vshrl.u32 %v122, 7
    %v124 = vsub.s32 0, %v123
    %v125 = vrot.slane %v108, %v124
    %v126 = vlaneseq
    %v127 = vshrl.u32 %v126, 7
    %v128 = vsub.s32 0, %v127
    %v129 = vrot.slane %v115, %v128
    %v130 = vlaneseq
    %v131 = vshrl.u32 %v130, 7
    %v132 = vsub.s32 0, %v131
    %v133 = vrot.slane %v116, %v132
    %v134 = vlaneseq
    %v135 = vshrl.u32 %v134, 7
    %v136 = vsub.s32 0, %v135
    %v137 = vrot.slane %v117, %v136
    %143 = vset.pattern.permute.xlu0 0
    %144 = vperm.xlu0 %143, %v118
    %v145 = vpop.permute.xlu0 %144
    %148 = vset.pattern.permute.xlu0 0
    %149 = vperm.xlu0 %148, %v119
    %v150 = vpop.permute.xlu0 %149
    %153 = vset.pattern.permute.xlu0 0
    %154 = vperm.xlu0 %153, %v120
    %v155 = vpop.permute.xlu0 %154
    %158 = vset.pattern.permute.xlu0 0
    %159 = vperm.xlu0 %158, %v121
    %v160 = vpop.permute.xlu0 %159
    %v162 = vmul.f32 %v125, %v145
    %v163 = vmul.f32 %v125, %v150
    %v164 = vmul.f32 %v125, %v155
    %v165 = vmul.f32 %v125, %v160
    %v166 = vmul.f32 %v129, %v145
    %v167 = vmul.f32 %v129, %v150
    %v168 = vmul.f32 %v129, %v155
    %v169 = vmul.f32 %v129, %v160
    %v170 = vmul.f32 %v133, %v145
    %v171 = vmul.f32 %v133, %v150
    %v172 = vmul.f32 %v133, %v155
    %v173 = vmul.f32 %v133, %v160
    %v174 = vmul.f32 %v137, %v145
    %v175 = vmul.f32 %v137, %v150
    %v176 = vmul.f32 %v137, %v155
    %v177 = vmul.f32 %v137, %v160
    %v180 = vunpack.c.l.s4 1966171168
    %v181 = vunpack.c.0.s8 %v180
    %v182 = vlaneseq
    %v183 = vshrl.u32 %v182, 7
    %v184 = vsub.s32 %v181, %v183
    %v185 = vrot.slane %v92, %v184
    %v186 = vcombine.high %v185, %v185
    %v188 = vunpack.c.l.s4 1966171168
    %v189 = vunpack.c.0.s8 %v188
    %v190 = vlaneseq
    %v191 = vshrl.u32 %v190, 7
    %v192 = vsub.s32 %v189, %v191
    %v193 = vrot.slane %v185, %v192
    %v195 = vunpack.c.l.s4 1966171168
    %v196 = vunpack.c.0.s8 %v195
    %v197 = vlaneseq
    %v198 = vshrl.u32 %v197, 7
    %v199 = vsub.s32 %v196, %v198
    %v200 = vrot.slane %v186, %v199
    %v201 = vcombine.high %v193, %v193
    %v202 = vcombine.high %v200, %v200
    %v203 = vld [vmem:[%s5] sm:$0xff]
    %v204 = vld [vmem:[%s5 + $0x8] sm:$0xff]
    %v205 = vld [vmem:[%s5 + $0x10] sm:$0xff]
    %v206 = vld [vmem:[%s5 + $0x18] sm:$0xff]
    %v207 = vlaneseq
    %v208 = vshrl.u32 %v207, 7
    %v209 = vsub.s32 0, %v208
    %v210 = vrot.slane %v193, %v209
    %v211 = vlaneseq
    %v212 = vshrl.u32 %v211, 7
    %v213 = vsub.s32 0, %v212
    %v214 = vrot.slane %v200, %v213
    %v215 = vlaneseq
    %v216 = vshrl.u32 %v215, 7
    %v217 = vsub.s32 0, %v216
    %v218 = vrot.slane %v201, %v217
    %v219 = vlaneseq
    %v220 = vshrl.u32 %v219, 7
    %v221 = vsub.s32 0, %v220
    %v222 = vrot.slane %v202, %v221
    %228 = vset.pattern.permute.xlu0 0
    %229 = vperm.xlu0 %228, %v203
    %v230 = vpop.permute.xlu0 %229
    %233 = vset.pattern.permute.xlu0 0
    %234 = vperm.xlu0 %233, %v204
    %v235 = vpop.permute.xlu0 %234
    %238 = vset.pattern.permute.xlu0 0
    %239 = vperm.xlu0 %238, %v205
    %v240 = vpop.permute.xlu0 %239
    %243 = vset.pattern.permute.xlu0 0
    %244 = vperm.xlu0 %243, %v206
    %v245 = vpop.permute.xlu0 %244
    %v247 = vmul.f32 %v210, %v230
    %v248 = vmul.f32 %v210, %v235
    %v249 = vmul.f32 %v210, %v240
    %v250 = vmul.f32 %v210, %v245
    %v251 = vmul.f32 %v214, %v230
    %v252 = vmul.f32 %v214, %v235
    %v253 = vmul.f32 %v214, %v240
    %v254 = vmul.f32 %v214, %v245
    %v255 = vmul.f32 %v218, %v230
    %v256 = vmul.f32 %v218, %v235
    %v257 = vmul.f32 %v218, %v240
    %v258 = vmul.f32 %v218, %v245
    %v259 = vmul.f32 %v222, %v230
    %v260 = vmul.f32 %v222, %v235
    %v261 = vmul.f32 %v222, %v240
    %v262 = vmul.f32 %v222, %v245
    %v263 = vadd.f32 %v162, %v247
    %v264 = vadd.f32 %v163, %v248
    %v265 = vadd.f32 %v164, %v249
    %v266 = vadd.f32 %v165, %v250
    %v267 = vadd.f32 %v166, %v251
    %v268 = vadd.f32 %v167, %v252
    %v269 = vadd.f32 %v168, %v253
    %v270 = vadd.f32 %v169, %v254
    %v271 = vadd.f32 %v170, %v255
    %v272 = vadd.f32 %v171, %v256
    %v273 = vadd.f32 %v172, %v257
    %v274 = vadd.f32 %v173, %v258
    %v275 = vadd.f32 %v174, %v259
    %v276 = vadd.f32 %v175, %v260
    %v277 = vadd.f32 %v176, %v261
    %v278 = vadd.f32 %v177, %v262
    %v279 = vld [vmem:[%s6] sm:$0xff]
    %v280 = vld [vmem:[%s6 + $0x8] sm:$0xff]
    %v281 = vld [vmem:[%s6 + $0x10] sm:$0xff]
    %v282 = vld [vmem:[%s6 + $0x18] sm:$0xff]
    %284 = vset.pattern.permute.xlu0 0
    %285 = vperm.xlu0 %284, %v279
    %v286 = vpop.permute.xlu0 %285
    %289 = vset.pattern.permute.xlu0 0
    %290 = vperm.xlu0 %289, %v280
    %v291 = vpop.permute.xlu0 %290
    %294 = vset.pattern.permute.xlu0 0
    %295 = vperm.xlu0 %294, %v281
    %v296 = vpop.permute.xlu0 %295
    %299 = vset.pattern.permute.xlu0 0
    %300 = vperm.xlu0 %299, %v282
    %v301 = vpop.permute.xlu0 %300
    %v303 = vadd.f32 %v263, %v286
    %v304 = vadd.f32 %v264, %v291
    %v305 = vadd.f32 %v265, %v296
    %v306 = vadd.f32 %v266, %v301
    %v307 = vadd.f32 %v267, %v286
    %v308 = vadd.f32 %v268, %v291
    %v309 = vadd.f32 %v269, %v296
    %v310 = vadd.f32 %v270, %v301
    %v311 = vadd.f32 %v271, %v286
    %v312 = vadd.f32 %v272, %v291
    %v313 = vadd.f32 %v273, %v296
    %v314 = vadd.f32 %v274, %v301
    %v315 = vadd.f32 %v275, %v286
    %v316 = vadd.f32 %v276, %v291
    %v317 = vadd.f32 %v277, %v296
    %v318 = vadd.f32 %v278, %v301
    %v319 = vadd.f32 %v303, %v307
    %v320 = vadd.f32 %v319, %v311
    %v321 = vadd.f32 %v320, %v315
    %322 = vadd.xlane.f32.xlu0 %v321
    %v323 = vpop.xlane.xlu0 %322
    %v324 = vadd.f32 %v304, %v308
    %v325 = vadd.f32 %v324, %v312
    %v326 = vadd.f32 %v325, %v316
    %327 = vadd.xlane.f32.xlu0 %v326
    %v328 = vpop.xlane.xlu0 %327
    %v329 = vadd.f32 %v305, %v309
    %v330 = vadd.f32 %v329, %v313
    %v331 = vadd.f32 %v330, %v317
    %332 = vadd.xlane.f32.xlu0 %v331
    %v333 = vpop.xlane.xlu0 %332
    %v334 = vadd.f32 %v306, %v310
    %v335 = vadd.f32 %v334, %v314
    %v336 = vadd.f32 %v335, %v318
    %337 = vadd.xlane.f32.xlu0 %v336
    %v338 = vpop.xlane.xlu0 %337
    %v339 = vrcp.pop 512.0
    %v340 = vmul.f32 %v323, %v339
    %v341 = vmul.f32 %v328, %v339
    %v342 = vmul.f32 %v333, %v339
    %v343 = vmul.f32 %v338, %v339
    %v344 = vsub.f32 %v303, %v340
    %v345 = vsub.f32 %v304, %v341
    %v346 = vsub.f32 %v305, %v342
    %v347 = vsub.f32 %v306, %v343
    %v348 = vsub.f32 %v307, %v340
    %v349 = vsub.f32 %v308, %v341
    %v350 = vsub.f32 %v309, %v342
    %v351 = vsub.f32 %v310, %v343
    %v352 = vsub.f32 %v311, %v340
    %v353 = vsub.f32 %v312, %v341
    %v354 = vsub.f32 %v313, %v342
    %v355 = vsub.f32 %v314, %v343
    %v356 = vsub.f32 %v315, %v340
    %v357 = vsub.f32 %v316, %v341
    %v358 = vsub.f32 %v317, %v342
    %v359 = vsub.f32 %v318, %v343
    %v360 = vmul.f32 %v344, %v344
    %v361 = vmul.f32 %v345, %v345
    %v362 = vmul.f32 %v346, %v346
    %v363 = vmul.f32 %v347, %v347
    %v364 = vmul.f32 %v348, %v348
    %v365 = vmul.f32 %v349, %v349
    %v366 = vmul.f32 %v350, %v350
    %v367 = vmul.f32 %v351, %v351
    %v368 = vmul.f32 %v352, %v352
    %v369 = vmul.f32 %v353, %v353
    %v370 = vmul.f32 %v354, %v354
    %v371 = vmul.f32 %v355, %v355
    %v372 = vmul.f32 %v356, %v356
    %v373 = vmul.f32 %v357, %v357
    %v374 = vmul.f32 %v358, %v358
    %v375 = vmul.f32 %v359, %v359
    %v376 = vadd.f32 %v360, %v364
    %v377 = vadd.f32 %v376, %v368
    %v378 = vadd.f32 %v377, %v372
    %379 = vadd.xlane.f32.xlu0 %v378
    %v380 = vpop.xlane.xlu0 %379
    %v381 = vadd.f32 %v361, %v365
    %v382 = vadd.f32 %v381, %v369
    %v383 = vadd.f32 %v382, %v373
    %384 = vadd.xlane.f32.xlu0 %v383
    %v385 = vpop.xlane.xlu0 %384
    %v386 = vadd.f32 %v362, %v366
    %v387 = vadd.f32 %v386, %v370
    %v388 = vadd.f32 %v387, %v374
    %389 = vadd.xlane.f32.xlu0 %v388
    %v390 = vpop.xlane.xlu0 %389
    %v391 = vadd.f32 %v363, %v367
    %v392 = vadd.f32 %v391, %v371
    %v393 = vadd.f32 %v392, %v375
    %394 = vadd.xlane.f32.xlu0 %v393
    %v395 = vpop.xlane.xlu0 %394
    %v396 = vmul.f32 %v380, %v339
    %v397 = vmul.f32 %v385, %v339
    %v398 = vmul.f32 %v390, %v339
    %v399 = vmul.f32 %v395, %v339
    %v400 = vadd.f32 %v396, 1e-05
    %v401 = vadd.f32 %v397, 1e-05
    %v402 = vadd.f32 %v398, 1e-05
    %v403 = vadd.f32 %v399, 1e-05
    %v404 = vrsqrt.pop %v400
    %v405 = vrsqrt.pop %v401
    %v406 = vrsqrt.pop %v402
    %v407 = vrsqrt.pop %v403
    %v408 = vmul.f32 %v344, %v404
    %v409 = vmul.f32 %v345, %v405
    %v410 = vmul.f32 %v346, %v406
    %v411 = vmul.f32 %v347, %v407
    %v412 = vmul.f32 %v348, %v404
    %v413 = vmul.f32 %v349, %v405
    %v414 = vmul.f32 %v350, %v406
    %v415 = vmul.f32 %v351, %v407
    %v416 = vmul.f32 %v352, %v404
    %v417 = vmul.f32 %v353, %v405
    %v418 = vmul.f32 %v354, %v406
    %v419 = vmul.f32 %v355, %v407
    %v420 = vmul.f32 %v356, %v404
    %v421 = vmul.f32 %v357, %v405
    %v422 = vmul.f32 %v358, %v406
    %v423 = vmul.f32 %v359, %v407
    %v424 = vld [vmem:[%s7] sm:$0xff]
    %v425 = vld [vmem:[%s7 + $0x8] sm:$0xff]
    %v426 = vld [vmem:[%s7 + $0x10] sm:$0xff]
    %v427 = vld [vmem:[%s7 + $0x18] sm:$0xff]
    %429 = vset.pattern.permute.xlu0 0
    %430 = vperm.xlu0 %429, %v424
    %v431 = vpop.permute.xlu0 %430
    %434 = vset.pattern.permute.xlu0 0
    %435 = vperm.xlu0 %434, %v425
    %v436 = vpop.permute.xlu0 %435
    %439 = vset.pattern.permute.xlu0 0
    %440 = vperm.xlu0 %439, %v426
    %v441 = vpop.permute.xlu0 %440
    %444 = vset.pattern.permute.xlu0 0
    %445 = vperm.xlu0 %444, %v427
    %v446 = vpop.permute.xlu0 %445
    %v448 = vmul.f32 %v408, %v431
    %v449 = vmul.f32 %v409, %v436
    %v450 = vmul.f32 %v410, %v441
    %v451 = vmul.f32 %v411, %v446
    %v452 = vmul.f32 %v412, %v431
    %v453 = vmul.f32 %v413, %v436
    %v454 = vmul.f32 %v414, %v441
    %v455 = vmul.f32 %v415, %v446
    %v456 = vmul.f32 %v416, %v431
    %v457 = vmul.f32 %v417, %v436
    %v458 = vmul.f32 %v418, %v441
    %v459 = vmul.f32 %v419, %v446
    %v460 = vmul.f32 %v420, %v431
    %v461 = vmul.f32 %v421, %v436
    %v462 = vmul.f32 %v422, %v441
    %v463 = vmul.f32 %v423, %v446
    %v464 = vld [vmem:[%s8] sm:$0xff]
    %v465 = vld [vmem:[%s8 + $0x8] sm:$0xff]
    %v466 = vld [vmem:[%s8 + $0x10] sm:$0xff]
    %v467 = vld [vmem:[%s8 + $0x18] sm:$0xff]
    %469 = vset.pattern.permute.xlu0 0
    %470 = vperm.xlu0 %469, %v464
    %v471 = vpop.permute.xlu0 %470
    %474 = vset.pattern.permute.xlu0 0
    %475 = vperm.xlu0 %474, %v465
    %v476 = vpop.permute.xlu0 %475
    %479 = vset.pattern.permute.xlu0 0
    %480 = vperm.xlu0 %479, %v466
    %v481 = vpop.permute.xlu0 %480
    %484 = vset.pattern.permute.xlu0 0
    %485 = vperm.xlu0 %484, %v467
    %v486 = vpop.permute.xlu0 %485
    %v488 = vadd.f32 %v448, %v471
    %v489 = vadd.f32 %v449, %v476
    %v490 = vadd.f32 %v450, %v481
    %v491 = vadd.f32 %v451, %v486
    %v492 = vadd.f32 %v452, %v471
    %v493 = vadd.f32 %v453, %v476
    %v494 = vadd.f32 %v454, %v481
    %v495 = vadd.f32 %v455, %v486
    %v496 = vadd.f32 %v456, %v471
    %v497 = vadd.f32 %v457, %v476
    %v498 = vadd.f32 %v458, %v481
    %v499 = vadd.f32 %v459, %v486
    %v500 = vadd.f32 %v460, %v471
    %v501 = vadd.f32 %v461, %v476
    %v502 = vadd.f32 %v462, %v481
    %v503 = vadd.f32 %v463, %v486
    %v504 = vmax.f32 %v488, 0.0
    %v505 = vmax.f32 %v489, 0.0
    %v506 = vmax.f32 %v490, 0.0
    %v507 = vmax.f32 %v491, 0.0
    %v508 = vmax.f32 %v492, 0.0
    %v509 = vmax.f32 %v493, 0.0
    %v510 = vmax.f32 %v494, 0.0
    %v511 = vmax.f32 %v495, 0.0
    %v512 = vmax.f32 %v496, 0.0
    %v513 = vmax.f32 %v497, 0.0
    %v514 = vmax.f32 %v498, 0.0
    %v515 = vmax.f32 %v499, 0.0
    %v516 = vmax.f32 %v500, 0.0
    %v517 = vmax.f32 %v501, 0.0
    %v518 = vmax.f32 %v502, 0.0
    %v519 = vmax.f32 %v503, 0.0
    %v520 = vld [vmem:[%s9] sm:$0xff]
    %v521 = vld [vmem:[%s9 + $0x8] sm:$0xff]
    %v522 = vld [vmem:[%s9 + $0x10] sm:$0xff]
    %v523 = vld [vmem:[%s9 + $0x18] sm:$0xff]
    %v524 = vld [vmem:[%s9 + $0x20] sm:$0xff]
    %v525 = vld [vmem:[%s9 + $0x28] sm:$0xff]
    %v526 = vld [vmem:[%s9 + $0x30] sm:$0xff]
    %v527 = vld [vmem:[%s9 + $0x38] sm:$0xff]
    %v528 = vld [vmem:[%s9 + $0x40] sm:$0xff]
    %v529 = vld [vmem:[%s9 + $0x48] sm:$0xff]
    %v530 = vld [vmem:[%s9 + $0x50] sm:$0xff]
    %v531 = vld [vmem:[%s9 + $0x58] sm:$0xff]
    %v532 = vld [vmem:[%s10] sm:$0xff]
    %v533 = vld [vmem:[%s10 + $0x8] sm:$0xff]
    %v534 = vld [vmem:[%s10 + $0x10] sm:$0xff]
    %v535 = vld [vmem:[%s10 + $0x18] sm:$0xff]
    %v536 = vld [vmem:[%s10 + $0x20] sm:$0xff]
    %v537 = vld [vmem:[%s10 + $0x28] sm:$0xff]
    %v538 = vld [vmem:[%s10 + $0x30] sm:$0xff]
    %v539 = vld [vmem:[%s10 + $0x38] sm:$0xff]
    %v540 = vld [vmem:[%s10 + $0x40] sm:$0xff]
    %v541 = vld [vmem:[%s10 + $0x48] sm:$0xff]
    %v542 = vld [vmem:[%s10 + $0x50] sm:$0xff]
    %v543 = vld [vmem:[%s10 + $0x58] sm:$0xff]
    %v544 = vld [vmem:[%s11] sm:$0x1]
    %546 = vset.pattern.permute.xlu0 0
    %547 = vperm.xlu0 %546, %v532
    %v548 = vpop.permute.xlu0 %547
    %551 = vset.pattern.permute.xlu0 0
    %552 = vperm.xlu0 %551, %v533
    %v553 = vpop.permute.xlu0 %552
    %556 = vset.pattern.permute.xlu0 0
    %557 = vperm.xlu0 %556, %v534
    %v558 = vpop.permute.xlu0 %557
    %561 = vset.pattern.permute.xlu0 0
    %562 = vperm.xlu0 %561, %v535
    %v563 = vpop.permute.xlu0 %562
    %566 = vset.pattern.permute.xlu0 0
    %567 = vperm.xlu0 %566, %v536
    %v568 = vpop.permute.xlu0 %567
    %571 = vset.pattern.permute.xlu0 0
    %572 = vperm.xlu0 %571, %v537
    %v573 = vpop.permute.xlu0 %572
    %576 = vset.pattern.permute.xlu0 0
    %577 = vperm.xlu0 %576, %v538
    %v578 = vpop.permute.xlu0 %577
    %581 = vset.pattern.permute.xlu0 0
    %582 = vperm.xlu0 %581, %v539
    %v583 = vpop.permute.xlu0 %582
    %586 = vset.pattern.permute.xlu0 0
    %587 = vperm.xlu0 %586, %v540
    %v588 = vpop.permute.xlu0 %587
    %591 = vset.pattern.permute.xlu0 0
    %592 = vperm.xlu0 %591, %v541
    %v593 = vpop.permute.xlu0 %592
    %596 = vset.pattern.permute.xlu0 0
    %597 = vperm.xlu0 %596, %v542
    %v598 = vpop.permute.xlu0 %597
    %601 = vset.pattern.permute.xlu0 0
    %602 = vperm.xlu0 %601, %v543
    %v603 = vpop.permute.xlu0 %602
    %vm605 = vcmask 261120
    %v607 = vsel %vm605, %v520, 0
    %v610 = vsel %vm605, %v521, 0
    %v613 = vsel %vm605, %v522, 0
    %v616 = vsel %vm605, %v523, 0
    %v619 = vsel %vm605, %v524, 0
    %v622 = vsel %vm605, %v525, 0
    %v625 = vsel %vm605, %v526, 0
    %v628 = vsel %vm605, %v527, 0
    %v631 = vsel %vm605, %v528, 0
    %v634 = vsel %vm605, %v529, 0
    %v637 = vsel %vm605, %v530, 0
    %v640 = vsel %vm605, %v531, 0
    %642 = vmatprep.subr.mxu0 0.0
    %643 = vmatpush1.msra.mxu0 %v504
    %644 = vmatprep.subr.mxu0 0.0
    %645 = vmatpush1.msra.mxu0 %v505
    %646 = vmatprep.subr.mxu0 0.0
    %647 = vmatpush1.msra.mxu0 %v506
    %648 = vmatprep.subr.mxu0 0.0
    %649 = vmatpush1.msra.mxu0 %v507
    %650 = vmatprep.subr.mxu0 0.0
    %651 = vmatpush1.msra.mxu0 0.0
    %652 = vmatprep.subr.mxu0 0.0
    %653 = vmatpush1.msra.mxu0 0.0
    %654 = vmatprep.subr.mxu0 0.0
    %655 = vmatpush1.msra.mxu0 0.0
    %656 = vmatprep.subr.mxu0 0.0
    %657 = vmatpush1.msra.mxu0 0.0
    %658 = vmatprep.subr.mxu0 0.0
    %659 = vmatpush1.msra.mxu0 0.0
    %660 = vmatprep.subr.mxu0 0.0
    %661 = vmatpush1.msra.mxu0 0.0
    %662 = vmatprep.subr.mxu0 0.0
    %663 = vmatpush1.msra.mxu0 0.0
    %664 = vmatprep.subr.mxu0 0.0
    %665 = vmatpush1.msra.mxu0 0.0
    %666 = vmatprep.subr.mxu0 0.0
    %667 = vmatpush1.msra.mxu0 0.0
    %668 = vmatprep.subr.mxu0 0.0
    %669 = vmatpush1.msra.mxu0 0.0
    %670 = vmatprep.subr.mxu0 0.0
    %671 = vmatpush1.msra.mxu0 0.0
    %672 = vmatprep.subr.mxu0 0.0
    %673 = vmatpush1.msra.mxu0 0.0
    %674 = vmatprep.subr.mxu0 0.0
    %675 = vmatpush1.msra.mxu0 0.0
    %676 = vmatprep.subr.mxu0 0.0
    %677 = vmatpush1.msra.mxu0 0.0
    %678 = vmatprep.subr.mxu0 0.0
    %679 = vmatpush1.msra.mxu0 0.0
    %680 = vmatprep.subr.mxu0 0.0
    %681 = vmatpush1.msra.mxu0 0.0
    %682 = vmatprep.subr.mxu0 0.0
    %683 = vmatpush1.msra.mxu0 0.0
    %684 = vmatprep.subr.mxu0 0.0
    %685 = vmatpush1.msra.mxu0 0.0
    %686 = vmatprep.subr.mxu0 0.0
    %687 = vmatpush1.msra.mxu0 0.0
    %688 = vmatprep.subr.mxu0 0.0
    %689 = vmatpush1.msra.mxu0 0.0
    %690 = vmatprep.subr.mxu0 0.0
    %691 = vmatpush1.msra.mxu0 0.0
    %692 = vmatprep.subr.mxu0 0.0
    %693 = vmatpush1.msra.mxu0 0.0
    %694 = vmatprep.subr.mxu0 0.0
    %695 = vmatpush1.msra.mxu0 0.0
    %696 = vmatprep.subr.mxu0 0.0
    %697 = vmatpush1.msra.mxu0 0.0
    %698 = vmatprep.subr.mxu0 0.0
    %699 = vmatpush1.msra.mxu0 0.0
    %700 = vmatprep.subr.mxu0 0.0
    %701 = vmatpush1.msra.mxu0 0.0
    %702 = vmatprep.subr.mxu0 0.0
    %703 = vmatpush1.msra.mxu0 0.0
    %704 = vmatprep.subr.mxu0 0.0
    %705 = vmatpush1.msra.mxu0 0.0
    %706 = vmatprep.mubr.f32.mxu0 0.0
    %707 = vmatmul.mubr.f32.gmra.mrb[0].mxu0 %v607
    %v708 = vpop.f32.mrb[0].mxu0
    %v709 = vadd.f32 %v548, %v708
    %v710 = vpop.f32.mrb[0].mxu0
    %711 = vmatprep.mubr.f32.mxu0 0.0
    %712 = vmatmul.mubr.f32.gmra.mrb[0].mxu0 %v610
    %v713 = vpop.f32.mrb[0].mxu0
    %v714 = vadd.f32 %v553, %v713
    %v715 = vpop.f32.mrb[0].mxu0
    %716 = vmatprep.mubr.f32.mxu0 0.0
    %717 = vmatmul.mubr.f32.gmra.mrb[0].mxu0 %v613
    %v718 = vpop.f32.mrb[0].mxu0
    %v719 = vadd.f32 %v558, %v718
    %v720 = vpop.f32.mrb[0].mxu0
    %721 = vmatprep.mubr.f32.mxu0 0.0
    %722 = vmatmul.mubr.f32.gmra.mrb[0].mxu0 %v616
    %v723 = vpop.f32.mrb[0].mxu0
    %v724 = vadd.f32 %v563, %v723
    %v725 = vpop.f32.mrb[0].mxu0
    %726 = vmatprep.mubr.f32.mxu0 0.0
    %727 = vmatmul.mubr.f32.gmra.mrb[0].mxu0 %v619
    %v728 = vpop.f32.mrb[0].mxu0
    %v729 = vadd.f32 %v568, %v728
    %v730 = vpop.f32.mrb[0].mxu0
    %731 = vmatprep.mubr.f32.mxu0 0.0
    %732 = vmatmul.mubr.f32.gmra.mrb[0].mxu0 %v622
    %v733 = vpop.f32.mrb[0].mxu0
    %v734 = vadd.f32 %v573, %v733
    %v735 = vpop.f32.mrb[0].mxu0
    %736 = vmatprep.mubr.f32.mxu0 0.0
    %737 = vmatmul.mubr.f32.gmra.mrb[0].mxu0 %v625
    %v738 = vpop.f32.mrb[0].mxu0
    %v739 = vadd.f32 %v578, %v738
    %v740 = vpop.f32.mrb[0].mxu0
    %741 = vmatprep.mubr.f32.mxu0 0.0
    %742 = vmatmul.mubr.f32.gmra.mrb[0].mxu0 %v628
    %v743 = vpop.f32.mrb[0].mxu0
    %v744 = vadd.f32 %v583, %v743
    %v745 = vpop.f32.mrb[0].mxu0
    %746 = vmatprep.mubr.f32.mxu0 0.0
    %747 = vmatmul.mubr.f32.gmra.mrb[0].mxu0 %v631
    %v748 = vpop.f32.mrb[0].mxu0
    %v749 = vadd.f32 %v588, %v748
    %v750 = vpop.f32.mrb[0].mxu0
    %751 = vmatprep.mubr.f32.mxu0 0.0
    %752 = vmatmul.mubr.f32.gmra.mrb[0].mxu0 %v634
    %v753 = vpop.f32.mrb[0].mxu0
    %v754 = vadd.f32 %v593, %v753
    %v755 = vpop.f32.mrb[0].mxu0
    %756 = vmatprep.mubr.f32.mxu0 0.0
    %757 = vmatmul.mubr.f32.gmra.mrb[0].mxu0 %v637
    %v758 = vpop.f32.mrb[0].mxu0
    %v759 = vadd.f32 %v598, %v758
    %v760 = vpop.f32.mrb[0].mxu0
    %761 = vmatprep.mubr.f32.mxu0 0.0
    %762 = vmatmul.mubr.f32.gmra.mrb[0].mxu0 %v640
    %v763 = vpop.f32.mrb[0].mxu0
    %v764 = vadd.f32 %v603, %v763
    %v765 = vpop.f32.mrb[0].mxu0
    %766 = vdwg.mxu0
    %v767 = vmax.f32 %v709, 0.0
    %v768 = vmax.f32 %v714, 0.0
    %v769 = vmax.f32 %v719, 0.0
    %v770 = vmax.f32 %v724, 0.0
    %v771 = vmax.f32 %v729, 0.0
    %v772 = vmax.f32 %v734, 0.0
    %v773 = vmax.f32 %v739, 0.0
    %v774 = vmax.f32 %v744, 0.0
    %v775 = vmax.f32 %v749, 0.0
    %v776 = vmax.f32 %v754, 0.0
    %v777 = vmax.f32 %v759, 0.0
    %v778 = vmax.f32 %v764, 0.0
    %779 = vst [vmem:[#allocation6] sm:$0xff] %v767
    %780 = vst [vmem:[#allocation6 + $0x8] sm:$0xff] %v768
    %781 = vst [vmem:[#allocation6 + $0x10] sm:$0xff] %v769
    %782 = vst [vmem:[#allocation6 + $0x18] sm:$0xff] %v770
    %783 = vst [vmem:[#allocation7] sm:$0xff] %v771
    %784 = vst [vmem:[#allocation7 + $0x8] sm:$0xff] %v772
    %785 = vst [vmem:[#allocation7 + $0x10] sm:$0xff] %v773
    %786 = vst [vmem:[#allocation7 + $0x18] sm:$0xff] %v774
    %v788 = vsel %vm605, %v544, 0
    %790 = vmatprep.subr.mxu0 0.0
    %791 = vmatpush1.msra.mxu0 %v775
    %792 = vmatprep.subr.mxu0 0.0
    %793 = vmatpush1.msra.mxu0 %v776
    %794 = vmatprep.subr.mxu0 0.0
    %795 = vmatpush1.msra.mxu0 %v777
    %796 = vmatprep.subr.mxu0 0.0
    %797 = vmatpush1.msra.mxu0 %v778
    %798 = vmatprep.subr.mxu0 0.0
    %799 = vmatpush1.msra.mxu0 0.0
    %800 = vmatprep.subr.mxu0 0.0
    %801 = vmatpush1.msra.mxu0 0.0
    %802 = vmatprep.subr.mxu0 0.0
    %803 = vmatpush1.msra.mxu0 0.0
    %804 = vmatprep.subr.mxu0 0.0
    %805 = vmatpush1.msra.mxu0 0.0
    %806 = vmatprep.subr.mxu0 0.0
    %807 = vmatpush1.msra.mxu0 0.0
    %808 = vmatprep.subr.mxu0 0.0
    %809 = vmatpush1.msra.mxu0 0.0
    %810 = vmatprep.subr.mxu0 0.0
    %811 = vmatpush1.msra.mxu0 0.0
    %812 = vmatprep.subr.mxu0 0.0
    %813 = vmatpush1.msra.mxu0 0.0
    %814 = vmatprep.subr.mxu0 0.0
    %815 = vmatpush1.msra.mxu0 0.0
    %816 = vmatprep.subr.mxu0 0.0
    %817 = vmatpush1.msra.mxu0 0.0
    %818 = vmatprep.subr.mxu0 0.0
    %819 = vmatpush1.msra.mxu0 0.0
    %820 = vmatprep.subr.mxu0 0.0
    %821 = vmatpush1.msra.mxu0 0.0
    %822 = vmatprep.subr.mxu0 0.0
    %823 = vmatpush1.msra.mxu0 0.0
    %824 = vmatprep.subr.mxu0 0.0
    %825 = vmatpush1.msra.mxu0 0.0
    %826 = vmatprep.subr.mxu0 0.0
    %827 = vmatpush1.msra.mxu0 0.0
    %828 = vmatprep.subr.mxu0 0.0
    %829 = vmatpush1.msra.mxu0 0.0
    %830 = vmatprep.subr.mxu0 0.0
    %831 = vmatpush1.msra.mxu0 0.0
    %832 = vmatprep.subr.mxu0 0.0
    %833 = vmatpush1.msra.mxu0 0.0
    %834 = vmatprep.subr.mxu0 0.0
    %835 = vmatpush1.msra.mxu0 0.0
    %836 = vmatprep.subr.mxu0 0.0
    %837 = vmatpush1.msra.mxu0 0.0
    %838 = vmatprep.subr.mxu0 0.0
    %839 = vmatpush1.msra.mxu0 0.0
    %840 = vmatprep.subr.mxu0 0.0
    %841 = vmatpush1.msra.mxu0 0.0
    %842 = vmatprep.subr.mxu0 0.0
    %843 = vmatpush1.msra.mxu0 0.0
    %844 = vmatprep.subr.mxu0 0.0
    %845 = vmatpush1.msra.mxu0 0.0
    %846 = vmatprep.subr.mxu0 0.0
    %847 = vmatpush1.msra.mxu0 0.0
    %848 = vmatprep.subr.mxu0 0.0
    %849 = vmatpush1.msra.mxu0 0.0
    %850 = vmatprep.subr.mxu0 0.0
    %851 = vmatpush1.msra.mxu0 0.0
    %852 = vmatprep.subr.mxu0 0.0
    %853 = vmatpush1.msra.mxu0 0.0
    %854 = vmatprep.mubr.f32.mxu0 0.0
    %855 = vmatmul.mubr.f32.gmra.mrb[0].mxu0 %v788
    %v856 = vpop.f32.mrb[0].mxu0
    %v857 = vadd.f32 0.0, %v856
    %v858 = vpop.f32.mrb[0].mxu0
    %859 = vdwg.mxu0
    %860 = vst [vmem:[#allocation9] sm:$0x1] %v857
    %861 = vmatprep.subr.mxu0 0.0
    %862 = vmatpush1.msra.mxu0 %v508
    %863 = vmatprep.subr.mxu0 0.0
    %864 = vmatpush1.msra.mxu0 %v509
    %865 = vmatprep.subr.mxu0 0.0
    %866 = vmatpush1.msra.mxu0 %v510
    %867 = vmatprep.subr.mxu0 0.0
    %868 = vmatpush1.msra.mxu0 %v511
    %869 = vmatprep.subr.mxu0 0.0
    %870 = vmatpush1.msra.mxu0 0.0
    %871 = vmatprep.subr.mxu0 0.0
    %872 = vmatpush1.msra.mxu0 0.0
    %873 = vmatprep.subr.mxu0 0.0
    %874 = vmatpush1.msra.mxu0 0.0
    %875 = vmatprep.subr.mxu0 0.0
    %876 = vmatpush1.msra.mxu0 0.0
    %877 = vmatprep.subr.mxu0 0.0
    %878 = vmatpush1.msra.mxu0 0.0
    %879 = vmatprep.subr.mxu0 0.0
    %880 = vmatpush1.msra.mxu0 0.0
    %881 = vmatprep.subr.mxu0 0.0
    %882 = vmatpush1.msra.mxu0 0.0
    %883 = vmatprep.subr.mxu0 0.0
    %884 = vmatpush1.msra.mxu0 0.0
    %885 = vmatprep.subr.mxu0 0.0
    %886 = vmatpush1.msra.mxu0 0.0
    %887 = vmatprep.subr.mxu0 0.0
    %888 = vmatpush1.msra.mxu0 0.0
    %889 = vmatprep.subr.mxu0 0.0
    %890 = vmatpush1.msra.mxu0 0.0
    %891 = vmatprep.subr.mxu0 0.0
    %892 = vmatpush1.msra.mxu0 0.0
    %893 = vmatprep.subr.mxu0 0.0
    %894 = vmatpush1.msra.mxu0 0.0
    %895 = vmatprep.subr.mxu0 0.0
    %896 = vmatpush1.msra.mxu0 0.0
    %897 = vmatprep.subr.mxu0 0.0
    %898 = vmatpush1.msra.mxu0 0.0
    %899 = vmatprep.subr.mxu0 0.0
    %900 = vmatpush1.msra.mxu0 0.0
    %901 = vmatprep.subr.mxu0 0.0
    %902 = vmatpush1.msra.mxu0 0.0
    %903 = vmatprep.subr.mxu0 0.0
    %904 = vmatpush1.msra.mxu0 0.0
    %905 = vmatprep.subr.mxu0 0.0
    %906 = vmatpush1.msra.mxu0 0.0
    %907 = vmatprep.subr.mxu0 0.0
    %908 = vmatpush1.msra.mxu0 0.0
    %909 = vmatprep.subr.mxu0 0.0
    %910 = vmatpush1.msra.mxu0 0.0
    %911 = vmatprep.subr.mxu0 0.0
    %912 = vmatpush1.msra.mxu0 0.0
    %913 = vmatprep.subr.mxu0 0.0
    %914 = vmatpush1.msra.mxu0 0.0
    %915 = vmatprep.subr.mxu0 0.0
    %916 = vmatpush1.msra.mxu0 0.0
    %917 = vmatprep.subr.mxu0 0.0
    %918 = vmatpush1.msra.mxu0 0.0
    %919 = vmatprep.subr.mxu0 0.0
    %920 = vmatpush1.msra.mxu0 0.0
    %921 = vmatprep.subr.mxu0 0.0
    %922 = vmatpush1.msra.mxu0 0.0
    %923 = vmatprep.subr.mxu0 0.0
    %924 = vmatpush1.msra.mxu0 0.0
    %925 = vmatprep.mubr.f32.mxu0 0.0
    %926 = vmatmul.mubr.f32.gmra.mrb[0].mxu0 %v607
    %v927 = vpop.f32.mrb[0].mxu0
    %v928 = vadd.f32 %v548, %v927
    %v929 = vpop.f32.mrb[0].mxu0
    %930 = vmatprep.mubr.f32.mxu0 0.0
    %931 = vmatmul.mubr.f32.gmra.mrb[0].mxu0 %v610
    %v932 = vpop.f32.mrb[0].mxu0
    %v933 = vadd.f32 %v553, %v932
    %v934 = vpop.f32.mrb[0].mxu0
    %935 = vmatprep.mubr.f32.mxu0 0.0
    %936 = vmatmul.mubr.f32.gmra.mrb[0].mxu0 %v613
    %v937 = vpop.f32.mrb[0].mxu0
    %v938 = vadd.f32 %v558, %v937
    %v939 = vpop.f32.mrb[0].mxu0
    %940 = vmatprep.mubr.f32.mxu0 0.0
    %941 = vmatmul.mubr.f32.gmra.mrb[0].mxu0 %v616
    %v942 = vpop.f32.mrb[0].mxu0
    %v943 = vadd.f32 %v563, %v942
    %v944 = vpop.f32.mrb[0].mxu0
    %945 = vmatprep.mubr.f32.mxu0 0.0
    %946 = vmatmul.mubr.f32.gmra.mrb[0].mxu0 %v619
    %v947 = vpop.f32.mrb[0].mxu0
    %v948 = vadd.f32 %v568, %v947
    %v949 = vpop.f32.mrb[0].mxu0
    %950 = vmatprep.mubr.f32.mxu0 0.0
    %951 = vmatmul.mubr.f32.gmra.mrb[0].mxu0 %v622
    %v952 = vpop.f32.mrb[0].mxu0
    %v953 = vadd.f32 %v573, %v952
    %v954 = vpop.f32.mrb[0].mxu0
    %955 = vmatprep.mubr.f32.mxu0 0.0
    %956 = vmatmul.mubr.f32.gmra.mrb[0].mxu0 %v625
    %v957 = vpop.f32.mrb[0].mxu0
    %v958 = vadd.f32 %v578, %v957
    %v959 = vpop.f32.mrb[0].mxu0
    %960 = vmatprep.mubr.f32.mxu0 0.0
    %961 = vmatmul.mubr.f32.gmra.mrb[0].mxu0 %v628
    %v962 = vpop.f32.mrb[0].mxu0
    %v963 = vadd.f32 %v583, %v962
    %v964 = vpop.f32.mrb[0].mxu0
    %965 = vmatprep.mubr.f32.mxu0 0.0
    %966 = vmatmul.mubr.f32.gmra.mrb[0].mxu0 %v631
    %v967 = vpop.f32.mrb[0].mxu0
    %v968 = vadd.f32 %v588, %v967
    %v969 = vpop.f32.mrb[0].mxu0
    %970 = vmatprep.mubr.f32.mxu0 0.0
    %971 = vmatmul.mubr.f32.gmra.mrb[0].mxu0 %v634
    %v972 = vpop.f32.mrb[0].mxu0
    %v973 = vadd.f32 %v593, %v972
    %v974 = vpop.f32.mrb[0].mxu0
    %975 = vmatprep.mubr.f32.mxu0 0.0
    %976 = vmatmul.mubr.f32.gmra.mrb[0].mxu0 %v637
    %v977 = vpop.f32.mrb[0].mxu0
    %v978 = vadd.f32 %v598, %v977
    %v979 = vpop.f32.mrb[0].mxu0
    %980 = vmatprep.mubr.f32.mxu0 0.0
    %981 = vmatmul.mubr.f32.gmra.mrb[0].mxu0 %v640
    %v982 = vpop.f32.mrb[0].mxu0
    %v983 = vadd.f32 %v603, %v982
    %v984 = vpop.f32.mrb[0].mxu0
    %985 = vdwg.mxu0
    %v986 = vmax.f32 %v928, 0.0
    %v987 = vmax.f32 %v933, 0.0
    %v988 = vmax.f32 %v938, 0.0
    %v989 = vmax.f32 %v943, 0.0
    %v990 = vmax.f32 %v948, 0.0
    %v991 = vmax.f32 %v953, 0.0
    %v992 = vmax.f32 %v958, 0.0
    %v993 = vmax.f32 %v963, 0.0
    %v994 = vmax.f32 %v968, 0.0
    %v995 = vmax.f32 %v973, 0.0
    %v996 = vmax.f32 %v978, 0.0
    %v997 = vmax.f32 %v983, 0.0
    %s998 = scalar_lea.vmem [#allocation6], 32
    %999 = vst [vmem:[%s998] sm:$0xff] %v986
    %1000 = vst [vmem:[%s998 + $0x8] sm:$0xff] %v987
    %1001 = vst [vmem:[%s998 + $0x10] sm:$0xff] %v988
    %1002 = vst [vmem:[%s998 + $0x18] sm:$0xff] %v989
    %s1003 = scalar_lea.vmem [#allocation7], 32
    %1004 = vst [vmem:[%s1003] sm:$0xff] %v990
    %1005 = vst [vmem:[%s1003 + $0x8] sm:$0xff] %v991
    %1006 = vst [vmem:[%s1003 + $0x10] sm:$0xff] %v992
    %1007 = vst [vmem:[%s1003 + $0x18] sm:$0xff] %v993
    %1008 = vmatprep.subr.mxu0 0.0
    %1009 = vmatpush1.msra.mxu0 %v994
    %1010 = vmatprep.subr.mxu0 0.0
    %1011 = vmatpush1.msra.mxu0 %v995
    %1012 = vmatprep.subr.mxu0 0.0
    %1013 = vmatpush1.msra.mxu0 %v996
    %1014 = vmatprep.subr.mxu0 0.0
    %1015 = vmatpush1.msra.mxu0 %v997
    %1016 = vmatprep.subr.mxu0 0.0
    %1017 = vmatpush1.msra.mxu0 0.0
    %1018 = vmatprep.subr.mxu0 0.0
    %1019 = vmatpush1.msra.mxu0 0.0
    %1020 = vmatprep.subr.mxu0 0.0
    %1021 = vmatpush1.msra.mxu0 0.0
    %1022 = vmatprep.subr.mxu0 0.0
    %1023 = vmatpush1.msra.mxu0 0.0
    %1024 = vmatprep.subr.mxu0 0.0
    %1025 = vmatpush1.msra.mxu0 0.0
    %1026 = vmatprep.subr.mxu0 0.0
    %1027 = vmatpush1.msra.mxu0 0.0
    %1028 = vmatprep.subr.mxu0 0.0
    %1029 = vmatpush1.msra.mxu0 0.0
    %1030 = vmatprep.subr.mxu0 0.0
    %1031 = vmatpush1.msra.mxu0 0.0
    %1032 = vmatprep.subr.mxu0 0.0
    %1033 = vmatpush1.msra.mxu0 0.0
    %1034 = vmatprep.subr.mxu0 0.0
    %1035 = vmatpush1.msra.mxu0 0.0
    %1036 = vmatprep.subr.mxu0 0.0
    %1037 = vmatpush1.msra.mxu0 0.0
    %1038 = vmatprep.subr.mxu0 0.0
    %1039 = vmatpush1.msra.mxu0 0.0
    %1040 = vmatprep.subr.mxu0 0.0
    %1041 = vmatpush1.msra.mxu0 0.0
    %1042 = vmatprep.subr.mxu0 0.0
    %1043 = vmatpush1.msra.mxu0 0.0
    %1044 = vmatprep.subr.mxu0 0.0
    %1045 = vmatpush1.msra.mxu0 0.0
    %1046 = vmatprep.subr.mxu0 0.0
    %1047 = vmatpush1.msra.mxu0 0.0
    %1048 = vmatprep.subr.mxu0 0.0
    %1049 = vmatpush1.msra.mxu0 0.0
    %1050 = vmatprep.subr.mxu0 0.0
    %1051 = vmatpush1.msra.mxu0 0.0
    %1052 = vmatprep.subr.mxu0 0.0
    %1053 = vmatpush1.msra.mxu0 0.0
    %1054 = vmatprep.subr.mxu0 0.0
    %1055 = vmatpush1.msra.mxu0 0.0
    %1056 = vmatprep.subr.mxu0 0.0
    %1057 = vmatpush1.msra.mxu0 0.0
    %1058 = vmatprep.subr.mxu0 0.0
    %1059 = vmatpush1.msra.mxu0 0.0
    %1060 = vmatprep.subr.mxu0 0.0
    %1061 = vmatpush1.msra.mxu0 0.0
    %1062 = vmatprep.subr.mxu0 0.0
    %1063 = vmatpush1.msra.mxu0 0.0
    %1064 = vmatprep.subr.mxu0 0.0
    %1065 = vmatpush1.msra.mxu0 0.0
    %1066 = vmatprep.subr.mxu0 0.0
    %1067 = vmatpush1.msra.mxu0 0.0
    %1068 = vmatprep.subr.mxu0 0.0
    %1069 = vmatpush1.msra.mxu0 0.0
    %1070 = vmatprep.subr.mxu0 0.0
    %1071 = vmatpush1.msra.mxu0 0.0
    %1072 = vmatprep.mubr.f32.mxu0 0.0
    %1073 = vmatmul.mubr.f32.gmra.mrb[0].mxu0 %v788
    %v1074 = vpop.f32.mrb[0].mxu0
    %v1075 = vadd.f32 0.0, %v1074
    %v1076 = vpop.f32.mrb[0].mxu0
    %1077 = vdwg.mxu0
    %s1078 = scalar_lea.vmem [#allocation9], 1
    %1079 = vst [vmem:[%s1078] sm:$0x1] %v1075
    %1080 = vmatprep.subr.mxu0 0.0
    %1081 = vmatpush1.msra.mxu0 %v512
    %1082 = vmatprep.subr.mxu0 0.0
    %1083 = vmatpush1.msra.mxu0 %v513
    %1084 = vmatprep.subr.mxu0 0.0
    %1085 = vmatpush1.msra.mxu0 %v514
    %1086 = vmatprep.subr.mxu0 0.0
    %1087 = vmatpush1.msra.mxu0 %v515
    %1088 = vmatprep.subr.mxu0 0.0
    %1089 = vmatpush1.msra.mxu0 0.0
    %1090 = vmatprep.subr.mxu0 0.0
    %1091 = vmatpush1.msra.mxu0 0.0
    %1092 = vmatprep.subr.mxu0 0.0
    %1093 = vmatpush1.msra.mxu0 0.0
    %1094 = vmatprep.subr.mxu0 0.0
    %1095 = vmatpush1.msra.mxu0 0.0
    %1096 = vmatprep.subr.mxu0 0.0
    %1097 = vmatpush1.msra.mxu0 0.0
    %1098 = vmatprep.subr.mxu0 0.0
    %1099 = vmatpush1.msra.mxu0 0.0
    %1100 = vmatprep.subr.mxu0 0.0
    %1101 = vmatpush1.msra.mxu0 0.0
    %1102 = vmatprep.subr.mxu0 0.0
    %1103 = vmatpush1.msra.mxu0 0.0
    %1104 = vmatprep.subr.mxu0 0.0
    %1105 = vmatpush1.msra.mxu0 0.0
    %1106 = vmatprep.subr.mxu0 0.0
    %1107 = vmatpush1.msra.mxu0 0.0
    %1108 = vmatprep.subr.mxu0 0.0
    %1109 = vmatpush1.msra.mxu0 0.0
    %1110 = vmatprep.subr.mxu0 0.0
    %1111 = vmatpush1.msra.mxu0 0.0
    %1112 = vmatprep.subr.mxu0 0.0
    %1113 = vmatpush1.msra.mxu0 0.0
    %1114 = vmatprep.subr.mxu0 0.0
    %1115 = vmatpush1.msra.mxu0 0.0
    %1116 = vmatprep.subr.mxu0 0.0
    %1117 = vmatpush1.msra.mxu0 0.0
    %1118 = vmatprep.subr.mxu0 0.0
    %1119 = vmatpush1.msra.mxu0 0.0
    %1120 = vmatprep.subr.mxu0 0.0
    %1121 = vmatpush1.msra.mxu0 0.0
    %1122 = vmatprep.subr.mxu0 0.0
    %1123 = vmatpush1.msra.mxu0 0.0
    %1124 = vmatprep.subr.mxu0 0.0
    %1125 = vmatpush1.msra.mxu0 0.0
    %1126 = vmatprep.subr.mxu0 0.0
    %1127 = vmatpush1.msra.mxu0 0.0
    %1128 = vmatprep.subr.mxu0 0.0
    %1129 = vmatpush1.msra.mxu0 0.0
    %1130 = vmatprep.subr.mxu0 0.0
    %1131 = vmatpush1.msra.mxu0 0.0
    %1132 = vmatprep.subr.mxu0 0.0
    %1133 = vmatpush1.msra.mxu0 0.0
    %1134 = vmatprep.subr.mxu0 0.0
    %1135 = vmatpush1.msra.mxu0 0.0
    %1136 = vmatprep.subr.mxu0 0.0
    %1137 = vmatpush1.msra.mxu0 0.0
    %1138 = vmatprep.subr.mxu0 0.0
    %1139 = vmatpush1.msra.mxu0 0.0
    %1140 = vmatprep.subr.mxu0 0.0
    %1141 = vmatpush1.msra.mxu0 0.0
    %1142 = vmatprep.subr.mxu0 0.0
    %1143 = vmatpush1.msra.mxu0 0.0
    %1144 = vmatprep.mubr.f32.mxu0 0.0
    %1145 = vmatmul.mubr.f32.gmra.mrb[0].mxu0 %v607
    %v1146 = vpop.f32.mrb[0].mxu0
    %v1147 = vadd.f32 %v548, %v1146
    %v1148 = vpop.f32.mrb[0].mxu0
    %1149 = vmatprep.mubr.f32.mxu0 0.0
    %1150 = vmatmul.mubr.f32.gmra.mrb[0].mxu0 %v610
    %v1151 = vpop.f32.mrb[0].mxu0
    %v1152 = vadd.f32 %v553, %v1151
    %v1153 = vpop.f32.mrb[0].mxu0
    %1154 = vmatprep.mubr.f32.mxu0 0.0
    %1155 = vmatmul.mubr.f32.gmra.mrb[0].mxu0 %v613
    %v1156 = vpop.f32.mrb[0].mxu0
    %v1157 = vadd.f32 %v558, %v1156
    %v1158 = vpop.f32.mrb[0].mxu0
    %1159 = vmatprep.mubr.f32.mxu0 0.0
    %1160 = vmatmul.mubr.f32.gmra.mrb[0].mxu0 %v616
    %v1161 = vpop.f32.mrb[0].mxu0
    %v1162 = vadd.f32 %v563, %v1161
    %v1163 = vpop.f32.mrb[0].mxu0
    %1164 = vmatprep.mubr.f32.mxu0 0.0
    %1165 = vmatmul.mubr.f32.gmra.mrb[0].mxu0 %v619
    %v1166 = vpop.f32.mrb[0].mxu0
    %v1167 = vadd.f32 %v568, %v1166
    %v1168 = vpop.f32.mrb[0].mxu0
    %1169 = vmatprep.mubr.f32.mxu0 0.0
    %1170 = vmatmul.mubr.f32.gmra.mrb[0].mxu0 %v622
    %v1171 = vpop.f32.mrb[0].mxu0
    %v1172 = vadd.f32 %v573, %v1171
    %v1173 = vpop.f32.mrb[0].mxu0
    %1174 = vmatprep.mubr.f32.mxu0 0.0
    %1175 = vmatmul.mubr.f32.gmra.mrb[0].mxu0 %v625
    %v1176 = vpop.f32.mrb[0].mxu0
    %v1177 = vadd.f32 %v578, %v1176
    %v1178 = vpop.f32.mrb[0].mxu0
    %1179 = vmatprep.mubr.f32.mxu0 0.0
    %1180 = vmatmul.mubr.f32.gmra.mrb[0].mxu0 %v628
    %v1181 = vpop.f32.mrb[0].mxu0
    %v1182 = vadd.f32 %v583, %v1181
    %v1183 = vpop.f32.mrb[0].mxu0
    %1184 = vmatprep.mubr.f32.mxu0 0.0
    %1185 = vmatmul.mubr.f32.gmra.mrb[0].mxu0 %v631
    %v1186 = vpop.f32.mrb[0].mxu0
    %v1187 = vadd.f32 %v588, %v1186
    %v1188 = vpop.f32.mrb[0].mxu0
    %1189 = vmatprep.mubr.f32.mxu0 0.0
    %1190 = vmatmul.mubr.f32.gmra.mrb[0].mxu0 %v634
    %v1191 = vpop.f32.mrb[0].mxu0
    %v1192 = vadd.f32 %v593, %v1191
    %v1193 = vpop.f32.mrb[0].mxu0
    %1194 = vmatprep.mubr.f32.mxu0 0.0
    %1195 = vmatmul.mubr.f32.gmra.mrb[0].mxu0 %v637
    %v1196 = vpop.f32.mrb[0].mxu0
    %v1197 = vadd.f32 %v598, %v1196
    %v1198 = vpop.f32.mrb[0].mxu0
    %1199 = vmatprep.mubr.f32.mxu0 0.0
    %1200 = vmatmul.mubr.f32.gmra.mrb[0].mxu0 %v640
    %v1201 = vpop.f32.mrb[0].mxu0
    %v1202 = vadd.f32 %v603, %v1201
    %v1203 = vpop.f32.mrb[0].mxu0
    %1204 = vdwg.mxu0
    %v1205 = vmax.f32 %v1147, 0.0
    %v1206 = vmax.f32 %v1152, 0.0
    %v1207 = vmax.f32 %v1157, 0.0
    %v1208 = vmax.f32 %v1162, 0.0
    %v1209 = vmax.f32 %v1167, 0.0
    %v1210 = vmax.f32 %v1172, 0.0
    %v1211 = vmax.f32 %v1177, 0.0
    %v1212 = vmax.f32 %v1182, 0.0
    %v1213 = vmax.f32 %v1187, 0.0
    %v1214 = vmax.f32 %v1192, 0.0
    %v1215 = vmax.f32 %v1197, 0.0
    %v1216 = vmax.f32 %v1202, 0.0
    %s1217 = scalar_lea.vmem [#allocation6], 64
    %1218 = vst [vmem:[%s1217] sm:$0xff] %v1205
    %1219 = vst [vmem:[%s1217 + $0x8] sm:$0xff] %v1206
    %1220 = vst [vmem:[%s1217 + $0x10] sm:$0xff] %v1207
    %1221 = vst [vmem:[%s1217 + $0x18] sm:$0xff] %v1208
    %s1222 = scalar_lea.vmem [#allocation7], 64
    %1223 = vst [vmem:[%s1222] sm:$0xff] %v1209
    %1224 = vst [vmem:[%s1222 + $0x8] sm:$0xff] %v1210
    %1225 = vst [vmem:[%s1222 + $0x10] sm:$0xff] %v1211
    %1226 = vst [vmem:[%s1222 + $0x18] sm:$0xff] %v1212
    %1227 = vmatprep.subr.mxu0 0.0
    %1228 = vmatpush1.msra.mxu0 %v1213
    %1229 = vmatprep.subr.mxu0 0.0
    %1230 = vmatpush1.msra.mxu0 %v1214
    %1231 = vmatprep.subr.mxu0 0.0
    %1232 = vmatpush1.msra.mxu0 %v1215
    %1233 = vmatprep.subr.mxu0 0.0
    %1234 = vmatpush1.msra.mxu0 %v1216
    %1235 = vmatprep.subr.mxu0 0.0
    %1236 = vmatpush1.msra.mxu0 0.0
    %1237 = vmatprep.subr.mxu0 0.0
    %1238 = vmatpush1.msra.mxu0 0.0
    %1239 = vmatprep.subr.mxu0 0.0
    %1240 = vmatpush1.msra.mxu0 0.0
    %1241 = vmatprep.subr.mxu0 0.0
    %1242 = vmatpush1.msra.mxu0 0.0
    %1243 = vmatprep.subr.mxu0 0.0
    %1244 = vmatpush1.msra.mxu0 0.0
    %1245 = vmatprep.subr.mxu0 0.0
    %1246 = vmatpush1.msra.mxu0 0.0
    %1247 = vmatprep.subr.mxu0 0.0
    %1248 = vmatpush1.msra.mxu0 0.0
    %1249 = vmatprep.subr.mxu0 0.0
    %1250 = vmatpush1.msra.mxu0 0.0
    %1251 = vmatprep.subr.mxu0 0.0
    %1252 = vmatpush1.msra.mxu0 0.0
    %1253 = vmatprep.subr.mxu0 0.0
    %1254 = vmatpush1.msra.mxu0 0.0
    %1255 = vmatprep.subr.mxu0 0.0
    %1256 = vmatpush1.msra.mxu0 0.0
    %1257 = vmatprep.subr.mxu0 0.0
    %1258 = vmatpush1.msra.mxu0 0.0
    %1259 = vmatprep.subr.mxu0 0.0
    %1260 = vmatpush1.msra.mxu0 0.0
    %1261 = vmatprep.subr.mxu0 0.0
    %1262 = vmatpush1.msra.mxu0 0.0
    %1263 = vmatprep.subr.mxu0 0.0
    %1264 = vmatpush1.msra.mxu0 0.0
    %1265 = vmatprep.subr.mxu0 0.0
    %1266 = vmatpush1.msra.mxu0 0.0
    %1267 = vmatprep.subr.mxu0 0.0
    %1268 = vmatpush1.msra.mxu0 0.0
    %1269 = vmatprep.subr.mxu0 0.0
    %1270 = vmatpush1.msra.mxu0 0.0
    %1271 = vmatprep.subr.mxu0 0.0
    %1272 = vmatpush1.msra.mxu0 0.0
    %1273 = vmatprep.subr.mxu0 0.0
    %1274 = vmatpush1.msra.mxu0 0.0
    %1275 = vmatprep.subr.mxu0 0.0
    %1276 = vmatpush1.msra.mxu0 0.0
    %1277 = vmatprep.subr.mxu0 0.0
    %1278 = vmatpush1.msra.mxu0 0.0
    %1279 = vmatprep.subr.mxu0 0.0
    %1280 = vmatpush1.msra.mxu0 0.0
    %1281 = vmatprep.subr.mxu0 0.0
    %1282 = vmatpush1.msra.mxu0 0.0
    %1283 = vmatprep.subr.mxu0 0.0
    %1284 = vmatpush1.msra.mxu0 0.0
    %1285 = vmatprep.subr.mxu0 0.0
    %1286 = vmatpush1.msra.mxu0 0.0
    %1287 = vmatprep.subr.mxu0 0.0
    %1288 = vmatpush1.msra.mxu0 0.0
    %1289 = vmatprep.subr.mxu0 0.0
    %1290 = vmatpush1.msra.mxu0 0.0
    %1291 = vmatprep.mubr.f32.mxu0 0.0
    %1292 = vmatmul.mubr.f32.gmra.mrb[0].mxu0 %v788
    %v1293 = vpop.f32.mrb[0].mxu0
    %v1294 = vadd.f32 0.0, %v1293
    %v1295 = vpop.f32.mrb[0].mxu0
    %1296 = vdwg.mxu0
    %s1297 = scalar_lea.vmem [#allocation9], 2
    %1298 = vst [vmem:[%s1297] sm:$0x1] %v1294
    %1299 = vmatprep.subr.mxu0 0.0
    %1300 = vmatpush1.msra.mxu0 %v516
    %1301 = vmatprep.subr.mxu0 0.0
    %1302 = vmatpush1.msra.mxu0 %v517
    %1303 = vmatprep.subr.mxu0 0.0
    %1304 = vmatpush1.msra.mxu0 %v518
    %1305 = vmatprep.subr.mxu0 0.0
    %1306 = vmatpush1.msra.mxu0 %v519
    %1307 = vmatprep.subr.mxu0 0.0
    %1308 = vmatpush1.msra.mxu0 0.0
    %1309 = vmatprep.subr.mxu0 0.0
    %1310 = vmatpush1.msra.mxu0 0.0
    %1311 = vmatprep.subr.mxu0 0.0
    %1312 = vmatpush1.msra.mxu0 0.0
    %1313 = vmatprep.subr.mxu0 0.0
    %1314 = vmatpush1.msra.mxu0 0.0
    %1315 = vmatprep.subr.mxu0 0.0
    %1316 = vmatpush1.msra.mxu0 0.0
    %1317 = vmatprep.subr.mxu0 0.0
    %1318 = vmatpush1.msra.mxu0 0.0
    %1319 = vmatprep.subr.mxu0 0.0
    %1320 = vmatpush1.msra.mxu0 0.0
    %1321 = vmatprep.subr.mxu0 0.0
    %1322 = vmatpush1.msra.mxu0 0.0
    %1323 = vmatprep.subr.mxu0 0.0
    %1324 = vmatpush1.msra.mxu0 0.0
    %1325 = vmatprep.subr.mxu0 0.0
    %1326 = vmatpush1.msra.mxu0 0.0
    %1327 = vmatprep.subr.mxu0 0.0
    %1328 = vmatpush1.msra.mxu0 0.0
    %1329 = vmatprep.subr.mxu0 0.0
    %1330 = vmatpush1.msra.mxu0 0.0
    %1331 = vmatprep.subr.mxu0 0.0
    %1332 = vmatpush1.msra.mxu0 0.0
    %1333 = vmatprep.subr.mxu0 0.0
    %1334 = vmatpush1.msra.mxu0 0.0
    %1335 = vmatprep.subr.mxu0 0.0
    %1336 = vmatpush1.msra.mxu0 0.0
    %1337 = vmatprep.subr.mxu0 0.0
    %1338 = vmatpush1.msra.mxu0 0.0
    %1339 = vmatprep.subr.mxu0 0.0
    %1340 = vmatpush1.msra.mxu0 0.0
    %1341 = vmatprep.subr.mxu0 0.0
    %1342 = vmatpush1.msra.mxu0 0.0
    %1343 = vmatprep.subr.mxu0 0.0
    %1344 = vmatpush1.msra.mxu0 0.0
    %1345 = vmatprep.subr.mxu0 0.0
    %1346 = vmatpush1.msra.mxu0 0.0
    %1347 = vmatprep.subr.mxu0 0.0
    %1348 = vmatpush1.msra.mxu0 0.0
    %1349 = vmatprep.subr.mxu0 0.0
    %1350 = vmatpush1.msra.mxu0 0.0
    %1351 = vmatprep.subr.mxu0 0.0
    %1352 = vmatpush1.msra.mxu0 0.0
    %1353 = vmatprep.subr.mxu0 0.0
    %1354 = vmatpush1.msra.mxu0 0.0
    %1355 = vmatprep.subr.mxu0 0.0
    %1356 = vmatpush1.msra.mxu0 0.0
    %1357 = vmatprep.subr.mxu0 0.0
    %1358 = vmatpush1.msra.mxu0 0.0
    %1359 = vmatprep.subr.mxu0 0.0
    %1360 = vmatpush1.msra.mxu0 0.0
    %1361 = vmatprep.subr.mxu0 0.0
    %1362 = vmatpush1.msra.mxu0 0.0
    %1363 = vmatprep.mubr.f32.mxu0 0.0
    %1364 = vmatmul.mubr.f32.gmra.mrb[0].mxu0 %v607
    %v1365 = vpop.f32.mrb[0].mxu0
    %v1366 = vadd.f32 %v548, %v1365
    %v1367 = vpop.f32.mrb[0].mxu0
    %1368 = vmatprep.mubr.f32.mxu0 0.0
    %1369 = vmatmul.mubr.f32.gmra.mrb[0].mxu0 %v610
    %v1370 = vpop.f32.mrb[0].mxu0
    %v1371 = vadd.f32 %v553, %v1370
    %v1372 = vpop.f32.mrb[0].mxu0
    %1373 = vmatprep.mubr.f32.mxu0 0.0
    %1374 = vmatmul.mubr.f32.gmra.mrb[0].mxu0 %v613
    %v1375 = vpop.f32.mrb[0].mxu0
    %v1376 = vadd.f32 %v558, %v1375
    %v1377 = vpop.f32.mrb[0].mxu0
    %1378 = vmatprep.mubr.f32.mxu0 0.0
    %1379 = vmatmul.mubr.f32.gmra.mrb[0].mxu0 %v616
    %v1380 = vpop.f32.mrb[0].mxu0
    %v1381 = vadd.f32 %v563, %v1380
    %v1382 = vpop.f32.mrb[0].mxu0
    %1383 = vmatprep.mubr.f32.mxu0 0.0
    %1384 = vmatmul.mubr.f32.gmra.mrb[0].mxu0 %v619
    %v1385 = vpop.f32.mrb[0].mxu0
    %v1386 = vadd.f32 %v568, %v1385
    %v1387 = vpop.f32.mrb[0].mxu0
    %1388 = vmatprep.mubr.f32.mxu0 0.0
    %1389 = vmatmul.mubr.f32.gmra.mrb[0].mxu0 %v622
    %v1390 = vpop.f32.mrb[0].mxu0
    %v1391 = vadd.f32 %v573, %v1390
    %v1392 = vpop.f32.mrb[0].mxu0
    %1393 = vmatprep.mubr.f32.mxu0 0.0
    %1394 = vmatmul.mubr.f32.gmra.mrb[0].mxu0 %v625
    %v1395 = vpop.f32.mrb[0].mxu0
    %v1396 = vadd.f32 %v578, %v1395
    %v1397 = vpop.f32.mrb[0].mxu0
    %1398 = vmatprep.mubr.f32.mxu0 0.0
    %1399 = vmatmul.mubr.f32.gmra.mrb[0].mxu0 %v628
    %v1400 = vpop.f32.mrb[0].mxu0
    %v1401 = vadd.f32 %v583, %v1400
    %v1402 = vpop.f32.mrb[0].mxu0
    %1403 = vmatprep.mubr.f32.mxu0 0.0
    %1404 = vmatmul.mubr.f32.gmra.mrb[0].mxu0 %v631
    %v1405 = vpop.f32.mrb[0].mxu0
    %v1406 = vadd.f32 %v588, %v1405
    %v1407 = vpop.f32.mrb[0].mxu0
    %1408 = vmatprep.mubr.f32.mxu0 0.0
    %1409 = vmatmul.mubr.f32.gmra.mrb[0].mxu0 %v634
    %v1410 = vpop.f32.mrb[0].mxu0
    %v1411 = vadd.f32 %v593, %v1410
    %v1412 = vpop.f32.mrb[0].mxu0
    %1413 = vmatprep.mubr.f32.mxu0 0.0
    %1414 = vmatmul.mubr.f32.gmra.mrb[0].mxu0 %v637
    %v1415 = vpop.f32.mrb[0].mxu0
    %v1416 = vadd.f32 %v598, %v1415
    %v1417 = vpop.f32.mrb[0].mxu0
    %1418 = vmatprep.mubr.f32.mxu0 0.0
    %1419 = vmatmul.mubr.f32.gmra.mrb[0].mxu0 %v640
    %v1420 = vpop.f32.mrb[0].mxu0
    %v1421 = vadd.f32 %v603, %v1420
    %v1422 = vpop.f32.mrb[0].mxu0
    %1423 = vdwg.mxu0
    %v1424 = vmax.f32 %v1366, 0.0
    %v1425 = vmax.f32 %v1371, 0.0
    %v1426 = vmax.f32 %v1376, 0.0
    %v1427 = vmax.f32 %v1381, 0.0
    %v1428 = vmax.f32 %v1386, 0.0
    %v1429 = vmax.f32 %v1391, 0.0
    %v1430 = vmax.f32 %v1396, 0.0
    %v1431 = vmax.f32 %v1401, 0.0
    %v1432 = vmax.f32 %v1406, 0.0
    %v1433 = vmax.f32 %v1411, 0.0
    %v1434 = vmax.f32 %v1416, 0.0
    %v1435 = vmax.f32 %v1421, 0.0
    %s1436 = scalar_lea.vmem [#allocation6], 96
    %1437 = vst [vmem:[%s1436] sm:$0xff] %v1424
    %1438 = vst [vmem:[%s1436 + $0x8] sm:$0xff] %v1425
    %1439 = vst [vmem:[%s1436 + $0x10] sm:$0xff] %v1426
    %1440 = vst [vmem:[%s1436 + $0x18] sm:$0xff] %v1427
    %s1441 = scalar_lea.vmem [#allocation7], 96
    %1442 = vst [vmem:[%s1441] sm:$0xff] %v1428
    %1443 = vst [vmem:[%s1441 + $0x8] sm:$0xff] %v1429
    %1444 = vst [vmem:[%s1441 + $0x10] sm:$0xff] %v1430
    %1445 = vst [vmem:[%s1441 + $0x18] sm:$0xff] %v1431
    %1446 = vmatprep.subr.mxu0 0.0
    %1447 = vmatpush1.msra.mxu0 %v1432
    %1448 = vmatprep.subr.mxu0 0.0
    %1449 = vmatpush1.msra.mxu0 %v1433
    %1450 = vmatprep.subr.mxu0 0.0
    %1451 = vmatpush1.msra.mxu0 %v1434
    %1452 = vmatprep.subr.mxu0 0.0
    %1453 = vmatpush1.msra.mxu0 %v1435
    %1454 = vmatprep.subr.mxu0 0.0
    %1455 = vmatpush1.msra.mxu0 0.0
    %1456 = vmatprep.subr.mxu0 0.0
    %1457 = vmatpush1.msra.mxu0 0.0
    %1458 = vmatprep.subr.mxu0 0.0
    %1459 = vmatpush1.msra.mxu0 0.0
    %1460 = vmatprep.subr.mxu0 0.0
    %1461 = vmatpush1.msra.mxu0 0.0
    %1462 = vmatprep.subr.mxu0 0.0
    %1463 = vmatpush1.msra.mxu0 0.0
    %1464 = vmatprep.subr.mxu0 0.0
    %1465 = vmatpush1.msra.mxu0 0.0
    %1466 = vmatprep.subr.mxu0 0.0
    %1467 = vmatpush1.msra.mxu0 0.0
    %1468 = vmatprep.subr.mxu0 0.0
    %1469 = vmatpush1.msra.mxu0 0.0
    %1470 = vmatprep.subr.mxu0 0.0
    %1471 = vmatpush1.msra.mxu0 0.0
    %1472 = vmatprep.subr.mxu0 0.0
    %1473 = vmatpush1.msra.mxu0 0.0
    %1474 = vmatprep.subr.mxu0 0.0
    %1475 = vmatpush1.msra.mxu0 0.0
    %1476 = vmatprep.subr.mxu0 0.0
    %1477 = vmatpush1.msra.mxu0 0.0
    %1478 = vmatprep.subr.mxu0 0.0
    %1479 = vmatpush1.msra.mxu0 0.0
    %1480 = vmatprep.subr.mxu0 0.0
    %1481 = vmatpush1.msra.mxu0 0.0
    %1482 = vmatprep.subr.mxu0 0.0
    %1483 = vmatpush1.msra.mxu0 0.0
    %1484 = vmatprep.subr.mxu0 0.0
    %1485 = vmatpush1.msra.mxu0 0.0
    %1486 = vmatprep.subr.mxu0 0.0
    %1487 = vmatpush1.msra.mxu0 0.0
    %1488 = vmatprep.subr.mxu0 0.0
    %1489 = vmatpush1.msra.mxu0 0.0
    %1490 = vmatprep.subr.mxu0 0.0
    %1491 = vmatpush1.msra.mxu0 0.0
    %1492 = vmatprep.subr.mxu0 0.0
    %1493 = vmatpush1.msra.mxu0 0.0
    %1494 = vmatprep.subr.mxu0 0.0
    %1495 = vmatpush1.msra.mxu0 0.0
    %1496 = vmatprep.subr.mxu0 0.0
    %1497 = vmatpush1.msra.mxu0 0.0
    %1498 = vmatprep.subr.mxu0 0.0
    %1499 = vmatpush1.msra.mxu0 0.0
    %1500 = vmatprep.subr.mxu0 0.0
    %1501 = vmatpush1.msra.mxu0 0.0
    %1502 = vmatprep.subr.mxu0 0.0
    %1503 = vmatpush1.msra.mxu0 0.0
    %1504 = vmatprep.subr.mxu0 0.0
    %1505 = vmatpush1.msra.mxu0 0.0
    %1506 = vmatprep.subr.mxu0 0.0
    %1507 = vmatpush1.msra.mxu0 0.0
    %1508 = vmatprep.subr.mxu0 0.0
    %1509 = vmatpush1.msra.mxu0 0.0
    %1510 = vmatprep.mubr.f32.mxu0 0.0
    %1511 = vmatmul.mubr.f32.gmra.mrb[0].mxu0 %v788
    %v1512 = vpop.f32.mrb[0].mxu0
    %v1513 = vadd.f32 0.0, %v1512
    %v1514 = vpop.f32.mrb[0].mxu0
    %1515 = vdwg.mxu0
    %s1516 = scalar_lea.vmem [#allocation9], 3
    %1517 = vst [vmem:[%s1516] sm:$0x1] %v1513
    // Predicated region
    $region54: #{tpu_custom_call.1} parent=1 // pred_check
      _
    $region55: #{tpu_custom_call.1} parent=1 // pred_check_branch
      %1519 = sbr.rel (0) target = $region57
    $region56: #{tpu_custom_call.1} parent=1 // pred_region
      %s1521 = ssub.s32 2048, 2048
      %1522 = vsyncadd [#allocation4], %s1521
      %s1523 = sshll.u32 [#allocation6], 4
      %s1524 = int_to_ptr.vmem [resolvable:$true] %s1523
      %1529 = dma.vmem_to_hbm [thread:$0]  %s1524, 2048, %s12, [#allocation4], 128, 128, 8
    $region57: #{tpu_custom_call.1} parent=1 // pred_fallthru
      _
    // Predicated region
    $region58: #{tpu_custom_call.1} parent=1 // pred_check
      _
    $region59: #{tpu_custom_call.1} parent=1 // pred_check_branch
      %1531 = sbr.rel (0) target = $region61
    $region60: #{tpu_custom_call.1} parent=1 // pred_region
      %s1533 = ssub.s32 2048, 2048
      %1534 = vsyncadd [#allocation8], %s1533
      %s1535 = sshll.u32 [#allocation7], 4
      %s1536 = int_to_ptr.vmem [resolvable:$true] %s1535
      %1541 = dma.vmem_to_hbm [thread:$0]  %s1536, 2048, %s13, [#allocation8], 128, 128, 8
    $region61: #{tpu_custom_call.1} parent=1 // pred_fallthru
      _
    // Predicated region
    $region62: #{tpu_custom_call.1} parent=1 // pred_check
      _
    $region63: #{tpu_custom_call.1} parent=1 // pred_check_branch
      %1543 = sbr.rel (0) target = $region65
    $region64: #{tpu_custom_call.1} parent=1 // pred_region
      %s1545 = ssub.s32 64, 64
      %1546 = vsyncadd [#allocation8], %s1545
      %s1547 = sshll.u32 [#allocation9], 4
      %s1548 = int_to_ptr.vmem [resolvable:$true] %s1547
      %1553 = dma.vmem_to_hbm [thread:$0]  %s1548, 64, %s14, [#allocation8], 16, 16, 1
    $region65: #{tpu_custom_call.1} parent=1 // pred_fallthru
      _
    // Predicated region
    $region66: #{tpu_custom_call.1} parent=1 // pred_check
      _
    $region67: #{tpu_custom_call.1} parent=1 // pred_check_branch
      %1555 = sbr.rel (0) target = $region69
    $region68: #{tpu_custom_call.1} parent=1 // pred_region
      %1556 = dma.done [#allocation4], 2048
    $region69: #{tpu_custom_call.1} parent=1 // pred_fallthru
      _
    // Predicated region
    $region70: #{tpu_custom_call.1} parent=1 // pred_check
      _
    $region71: #{tpu_custom_call.1} parent=1 // pred_check_branch
      %1558 = sbr.rel (0) target = $region73
    $region72: #{tpu_custom_call.1} parent=1 // pred_region
      %1559 = dma.done [#allocation8], 2048
    $region73: #{tpu_custom_call.1} parent=1 // pred_fallthru
      _
    // Predicated region
    $region74: #{tpu_custom_call.1} parent=1 // pred_check
      _
    $region75: #{tpu_custom_call.1} parent=1 // pred_check_branch
      %1561 = sbr.rel (0) target = $region77
    $region76: #{tpu_custom_call.1} parent=1 // pred_region
      %1562 = dma.done [#allocation8], 64
    $region77: #{tpu_custom_call.1} parent=1 // pred_fallthru
      _
    %1563 = vsyncpa [#allocation4], 1
    %1564 = vsyncpa [#allocation8], 1
    %1565 = vsyncpa [#allocation5], 1

</llo_original>
